<compile_context>
chip_gen: v7x
topology: tpu7x:2x2x1
jax: 0.10.0
libtpu: 0.0.40
codegen_flags: <defaults>
</compile_context>

<pallas_src>
import jax
import jax.numpy as jnp
from jax.experimental import pallas as pl
from jax.experimental.pallas import tpu as pltpu


def _round_up(x, m):
    return (x + m - 1) // m * m


def _mlp_tail(h1, w2_ref, b2_ref, w3_ref, b3_ref, out_ref):
    """fc2 + ReLU + output layer, writing a lane-dense [1, TB] logits row."""
    # fc2: bf16 MXU operands, f32 accumulation, f32 elementwise.
    h2 = jnp.dot(h1.astype(jnp.bfloat16), w2_ref[...],
                 preferred_element_type=jnp.float32)
    h2 = jnp.maximum(h2 + b2_ref[...], 0.0)

    # output layer (64 -> 1): w3 [1, 64] contracted with h2 [TB, 64] on the
    # last dim (the standard q @ k^T MXU pattern) -> [1, TB] row, lane-dense.
    logits = jax.lax.dot_general(
        w3_ref[...], h2.astype(jnp.bfloat16),
        dimension_numbers=(((1,), (1,)), ((), ())),
        preferred_element_type=jnp.float32)
    out_ref[...] = logits + b3_ref[0, 0]          # b3 is an SMEM scalar


def ncf_fused_kernel(ids_ref, utab_ref, itab_ref, w1u_ref, w1i_ref, b1_ref,
                     w2_ref, b2_ref, w3_ref, b3_ref, out_ref):
    """In-kernel embedding lookup (one-hot bf16 MXU gather) + MLP."""
    tb = ids_ref.shape[0]
    nu = utab_ref.shape[0]
    ni = itab_ref.shape[0]

    uid = ids_ref[:, 0:1]                         # [TB, 1] int32
    iid = ids_ref[:, 1:2]                         # [TB, 1] int32

    oh_u = (jax.lax.broadcasted_iota(jnp.int32, (tb, nu), 1) == uid
            ).astype(jnp.bfloat16)                # [TB, nu]
    oh_i = (jax.lax.broadcasted_iota(jnp.int32, (tb, ni), 1) == iid
            ).astype(jnp.bfloat16)                # [TB, ni]

    # Exact row gather via MXU (one-hot values are exactly 0/1 in bf16).
    ue = jnp.dot(oh_u, utab_ref[...], preferred_element_type=jnp.float32)
    ie = jnp.dot(oh_i, itab_ref[...], preferred_element_type=jnp.float32)

    # fc1 split over user/item halves (no input concat needed on this path).
    h1 = jnp.dot(ue.astype(jnp.bfloat16), w1u_ref[...],
                 preferred_element_type=jnp.float32)
    h1 = h1 + jnp.dot(ie.astype(jnp.bfloat16), w1i_ref[...],
                      preferred_element_type=jnp.float32)
    h1 = jnp.maximum(h1 + b1_ref[...], 0.0)

    _mlp_tail(h1, w2_ref, b2_ref, w3_ref, b3_ref, out_ref)


def ncf_gathered_kernel(x_ref, w1_ref, b1_ref, w2_ref, b2_ref, w3_ref, b3_ref,
                        out_ref):
    """Fallback: merged [TB, 2E] gathered embeddings + single fc1 dot + MLP."""
    h1 = jnp.dot(x_ref[...], w1_ref[...], preferred_element_type=jnp.float32)
    h1 = jnp.maximum(h1 + b1_ref[...], 0.0)
    _mlp_tail(h1, w2_ref, b2_ref, w3_ref, b3_ref, out_ref)


def ncf_forward(user, item, params, *, block_b=2048, fuse_embedding=None):
    """Pallas-backed forward pass of NCFModel (eval mode).

    Args:
      user: int32 [B] user ids
      item: int32 [B] item ids
      params: dict of weights (see init_params)
    Returns:
      float32 [B] logits, matching torch's x.squeeze().
    """
    utab = params["user_embedding"]               # bf16 [nu, E]
    itab = params["item_embedding"]               # bf16 [ni, E]
    nu, E = utab.shape
    ni = itab.shape[0]
    B = user.shape[0]
    H1 = params["w1"].shape[1]                    # 128
    H2 = params["w2"].shape[1]                    # 64

    if fuse_embedding is None:
        # Tables (and the one-hot temporaries) must fit comfortably in VMEM.
        fuse_embedding = (nu + ni) <= 1024

    # --- batch tiling ------------------------------------------------------
    # Big tiles (per-grid-step overhead ~0.35us dominates tiny per-tile work),
    # multiples of 256, and >=2 grid steps when possible so v7x's two
    # TensorCores both get work via dimension_semantics=("parallel",).
    blk = max(256, _round_up(block_b, 256))
    bp0 = _round_up(B, 256)
    if bp0 >= 512:
        blk = min(blk, _round_up(bp0 // 2, 256))
    TB = min(blk, bp0)
    Bp = _round_up(B, TB)
    G = Bp // TB

    def const2(shape):
        return pl.BlockSpec(shape, lambda i: (0, 0))

    out_shape = jax.ShapeDtypeStruct((G, TB), jnp.float32)
    out_specs = pl.BlockSpec((1, TB), lambda i: (i, 0))       # lane-dense row
    smem_scalar = pl.BlockSpec(memory_space=pltpu.MemorySpace.SMEM)
    cparams = pltpu.CompilerParams(dimension_semantics=("parallel",))

    if fuse_embedding:
        ids = jnp.stack([user.astype(jnp.int32), item.astype(jnp.int32)],
                        axis=1)                               # [B, 2]
        if Bp != B:
            ids = jnp.pad(ids, ((0, Bp - B), (0, 0)))         # pad rows use id 0
        w1u = params["w1"][:E]                                # [E, H1] bf16
        w1i = params["w1"][E:]                                # [E, H1] bf16

        out = pl.pallas_call(
            ncf_fused_kernel,
            out_shape=out_shape,
            grid=(G,),
            in_specs=[
                pl.BlockSpec((TB, 2), lambda i: (i, 0)),      # ids        [TB,2] i32
                const2((nu, E)),                              # user table [nu,E] bf16 (resident)
                const2((ni, E)),                              # item table [ni,E] bf16 (resident)
                const2((E, H1)),                              # w1 user half
                const2((E, H1)),                              # w1 item half
                const2((1, H1)),                              # b1 f32
                const2((H1, H2)),                             # w2 bf16
                const2((1, H2)),                              # b2 f32
                const2((1, H2)),                              # w3 row bf16
                smem_scalar,                                  # b3 scalar f32 (SMEM)
            ],
            out_specs=out_specs,
            compiler_params=cparams,
        )(ids, utab, itab, w1u, w1i, params["b1"],
          params["w2"], params["b2"], params["w3"], params["b3"])
    else:
        # Wrapper-side bf16 gather + concat (fused by XLA into one pass);
        # single merged [B, 2E] input -> one DMA + one fc1 dot per tile.
        x = jnp.concatenate(
            [jnp.take(utab, user, axis=0), jnp.take(itab, item, axis=0)],
            axis=1)                                           # [B, 2E] bf16
        if Bp != B:
            x = jnp.pad(x, ((0, Bp - B), (0, 0)))

        out = pl.pallas_call(
            ncf_gathered_kernel,
            out_shape=out_shape,
            grid=(G,),
            in_specs=[
                pl.BlockSpec((TB, 2 * E), lambda i: (i, 0)),  # merged embeddings
                const2((2 * E, H1)),                          # merged w1 bf16
                const2((1, H1)),                              # b1 f32
                const2((H1, H2)),                             # w2 bf16
                const2((1, H2)),                              # b2 f32
                const2((1, H2)),                              # w3 row bf16
                smem_scalar,                                  # b3 scalar f32 (SMEM)
            ],
            out_specs=out_specs,
            compiler_params=cparams,
        )(x, params["w1"], params["b1"], params["w2"], params["b2"],
          params["w3"], params["b3"])

    # Tile i, column t  <->  batch row i*TB + t ; drop padded rows.
    return out.reshape(-1)[:B]


def init_params(key, num_users, num_items, embedding_size=50):
    """Parameter init matching the module's shapes.

    nn.Embedding ~ N(0,1); nn.Linear ~ U(-1/sqrt(fan_in), 1/sqrt(fan_in)).
    Linear weights stored as [in, out]; MXU operands (embeddings, w1, w2, w3)
    stored in bf16, biases in f32.
    """
    keys = jax.random.split(key, 8)

    def linear(kw, kb, fan_in, fan_out):
        bound = 1.0 / jnp.sqrt(float(fan_in))
        w = jax.random.uniform(kw, (fan_in, fan_out), jnp.float32, -bound, bound)
        b = jax.random.uniform(kb, (1, fan_out), jnp.float32, -bound, bound)
        return w, b

    E = embedding_size
    w1, b1 = linear(keys[2], keys[3], 2 * E, 128)
    w2, b2 = linear(keys[4], keys[5], 128, 64)
    w3, b3 = linear(keys[6], keys[7], 64, 1)

    return {
        "user_embedding":
            jax.random.normal(keys[0], (num_users, E), jnp.float32).astype(jnp.bfloat16),
        "item_embedding":
            jax.random.normal(keys[1], (num_items, E), jnp.float32).astype(jnp.bfloat16),
        "w1": w1.astype(jnp.bfloat16),      # [2E, 128]
        "b1": b1,                           # [1, 128] f32
        "w2": w2.astype(jnp.bfloat16),      # [128, 64]
        "b2": b2,                           # [1, 64]  f32
        "w3": w3.T.astype(jnp.bfloat16),    # [1, 64]  (output row)
        "b3": b3,                           # [1, 1]   f32
    }


def ncf_reference(user, item, params):
    """Pure-JAX f32 reference for correctness check."""
    ue = jnp.take(params["user_embedding"], user, axis=0).astype(jnp.float32)
    ie = jnp.take(params["item_embedding"], item, axis=0).astype(jnp.float32)
    x = jnp.concatenate([ue, ie], axis=1)
    w1 = params["w1"].astype(jnp.float32)
    w2 = params["w2"].astype(jnp.float32)
    w3 = params["w3"].astype(jnp.float32)
    h1 = jnp.maximum(x @ w1 + params["b1"], 0.0)
    h2 = jnp.maximum(h1 @ w2 + params["b2"], 0.0)
    out = h2 @ w3.T + params["b3"]          # [B, 1]
    return out[:, 0]


if __name__ == "__main__":
    num_users, num_items, embedding_size, batch = 100, 200, 50, 8

    key = jax.random.PRNGKey(0)
    k_params, k_user, k_item = jax.random.split(key, 3)

    params = init_params(k_params, num_users, num_items, embedding_size)
    user = jax.random.randint(k_user, (batch,), 0, num_users, dtype=jnp.int32)
    item = jax.random.randint(k_item, (batch,), 0, num_items, dtype=jnp.int32)

    ref = ncf_reference(user, item, params)

    # Default path: fused in-kernel embedding lookup (tables are tiny here).
    out_fused = jax.block_until_ready(jax.jit(ncf_forward)(user, item, params))
    assert out_fused.shape == (batch,), out_fused.shape
    # bf16 MXU operands with f32 accumulation -> loosened tolerance.
    assert jnp.allclose(out_fused, ref, atol=5e-2, rtol=5e-2), (out_fused, ref)

    # Fallback path (wrapper bf16 gather + merged single-dot fc1) also checked.
    gathered_fn = jax.jit(
        lambda u, i, p: ncf_forward(u, i, p, fuse_embedding=False))
    out_gathered = jax.block_until_ready(gathered_fn(user, item, params))
    assert out_gathered.shape == (batch,), out_gathered.shape
    assert jnp.allclose(out_gathered, ref, atol=5e-2, rtol=5e-2), (out_gathered, ref)

    print("KERNEL_OK")
</pallas_src>

<mosaic_0001>
module attributes {stable_mosaic.version = 11 : i64} {
  func.func @ncf_fused_kernel(%arg0: i32, %arg1: memref<256x2xi32, #tpu.memory_space<vmem>>, %arg2: memref<100x50xbf16, #tpu.memory_space<vmem>>, %arg3: memref<200x50xbf16, #tpu.memory_space<vmem>>, %arg4: memref<50x128xbf16, #tpu.memory_space<vmem>>, %arg5: memref<50x128xbf16, #tpu.memory_space<vmem>>, %arg6: memref<1x128xf32, #tpu.memory_space<vmem>>, %arg7: memref<128x64xbf16, #tpu.memory_space<vmem>>, %arg8: memref<1x64xf32, #tpu.memory_space<vmem>>, %arg9: memref<1x64xbf16, #tpu.memory_space<vmem>>, %arg10: memref<1x1xf32, #tpu.memory_space<smem>>, %arg11: memref<1x256xf32, #tpu.memory_space<vmem>>) attributes {dimension_semantics = [#tpu.dimension_semantics<parallel>], iteration_bounds = array<i64: 1>, scalar_prefetch = 0 : i64, scratch_operands = 0 : i64, tpu.core_type = #tpu.core_type<tc>, window_params = [{transform_indices = @transform_0, window_bounds = array<i64: 256, 2>}, {pipeline_mode = #tpu.pipeline_mode<synchronous>, transform_indices = @transform_1, window_bounds = array<i64: 100, 50>}, {pipeline_mode = #tpu.pipeline_mode<synchronous>, transform_indices = @transform_2, window_bounds = array<i64: 200, 50>}, {pipeline_mode = #tpu.pipeline_mode<synchronous>, transform_indices = @transform_3, window_bounds = array<i64: 50, 128>}, {pipeline_mode = #tpu.pipeline_mode<synchronous>, transform_indices = @transform_4, window_bounds = array<i64: 50, 128>}, {pipeline_mode = #tpu.pipeline_mode<synchronous>, transform_indices = @transform_5, window_bounds = array<i64: 1, 128>}, {pipeline_mode = #tpu.pipeline_mode<synchronous>, transform_indices = @transform_6, window_bounds = array<i64: 128, 64>}, {pipeline_mode = #tpu.pipeline_mode<synchronous>, transform_indices = @transform_7, window_bounds = array<i64: 1, 64>}, {pipeline_mode = #tpu.pipeline_mode<synchronous>, transform_indices = @transform_8, window_bounds = array<i64: 1, 64>}, {transform_indices = @transform_9, window_bounds = array<i64: 1, 1>}, {transform_indices = @transform_10, window_bounds = array<i64: 1, 256>}]} {
    %c0 = arith.constant 0 : index
    %c0_0 = arith.constant 0 : index
    %0 = vector.load %arg1[%c0, %c0_0] : memref<256x2xi32, #tpu.memory_space<vmem>>, vector<256x1xi32>
    %c0_1 = arith.constant 0 : index
    %c1 = arith.constant 1 : index
    %1 = vector.load %arg1[%c0_1, %c1] : memref<256x2xi32, #tpu.memory_space<vmem>>, vector<256x1xi32>
    %2 = tpu.iota {dimensions = array<i32: 1>} : vector<256x100xi32>
    %3 = vector.broadcast %0 : vector<256x1xi32> to vector<256x100xi32>
    %4 = arith.cmpi eq, %2, %3 : vector<256x100xi32>
    %5 = arith.extui %4 : vector<256x100xi1> to vector<256x100xi32>
    %6 = arith.sitofp %5 : vector<256x100xi32> to vector<256x100xf32>
    %7 = arith.truncf %6 : vector<256x100xf32> to vector<256x100xbf16>
    %8 = tpu.iota {dimensions = array<i32: 1>} : vector<256x200xi32>
    %9 = vector.broadcast %1 : vector<256x1xi32> to vector<256x200xi32>
    %10 = arith.cmpi eq, %8, %9 : vector<256x200xi32>
    %11 = arith.extui %10 : vector<256x200xi1> to vector<256x200xi32>
    %12 = arith.sitofp %11 : vector<256x200xi32> to vector<256x200xf32>
    %13 = arith.truncf %12 : vector<256x200xf32> to vector<256x200xbf16>
    %c0_2 = arith.constant 0 : index
    %c0_3 = arith.constant 0 : index
    %14 = vector.load %arg2[%c0_2, %c0_3] : memref<100x50xbf16, #tpu.memory_space<vmem>>, vector<100x50xbf16>
    %cst = arith.constant dense<0.000000e+00> : vector<256x50xf32>
    %15 = tpu.matmul %7, %14, %cst {dimension_numbers = #tpu.dot_dimension_numbers<[1], [0], [0], [1], [0, 0, 1, 1], [], []>} : vector<256x100xbf16>, vector<100x50xbf16>, vector<256x50xf32> -> vector<256x50xf32>
    %c0_4 = arith.constant 0 : index
    %c0_5 = arith.constant 0 : index
    %16 = vector.load %arg3[%c0_4, %c0_5] : memref<200x50xbf16, #tpu.memory_space<vmem>>, vector<200x50xbf16>
    %cst_6 = arith.constant dense<0.000000e+00> : vector<256x50xf32>
    %17 = tpu.matmul %13, %16, %cst_6 {dimension_numbers = #tpu.dot_dimension_numbers<[1], [0], [0], [1], [0, 0, 1, 1], [], []>} : vector<256x200xbf16>, vector<200x50xbf16>, vector<256x50xf32> -> vector<256x50xf32>
    %18 = arith.truncf %15 : vector<256x50xf32> to vector<256x50xbf16>
    %c0_7 = arith.constant 0 : index
    %c0_8 = arith.constant 0 : index
    %19 = vector.load %arg4[%c0_7, %c0_8] : memref<50x128xbf16, #tpu.memory_space<vmem>>, vector<50x128xbf16>
    %cst_9 = arith.constant dense<0.000000e+00> : vector<256x128xf32>
    %20 = tpu.matmul %18, %19, %cst_9 {dimension_numbers = #tpu.dot_dimension_numbers<[1], [0], [0], [1], [0, 0, 1, 1], [], []>} : vector<256x50xbf16>, vector<50x128xbf16>, vector<256x128xf32> -> vector<256x128xf32>
    %21 = arith.truncf %17 : vector<256x50xf32> to vector<256x50xbf16>
    %c0_10 = arith.constant 0 : index
    %c0_11 = arith.constant 0 : index
    %22 = vector.load %arg5[%c0_10, %c0_11] : memref<50x128xbf16, #tpu.memory_space<vmem>>, vector<50x128xbf16>
    %cst_12 = arith.constant dense<0.000000e+00> : vector<256x128xf32>
    %23 = tpu.matmul %21, %22, %cst_12 {dimension_numbers = #tpu.dot_dimension_numbers<[1], [0], [0], [1], [0, 0, 1, 1], [], []>} : vector<256x50xbf16>, vector<50x128xbf16>, vector<256x128xf32> -> vector<256x128xf32>
    %24 = arith.addf %20, %23 : vector<256x128xf32>
    %c0_13 = arith.constant 0 : index
    %c0_14 = arith.constant 0 : index
    %25 = vector.load %arg6[%c0_13, %c0_14] : memref<1x128xf32, #tpu.memory_space<vmem>>, vector<1x128xf32>
    %26 = vector.broadcast %25 : vector<1x128xf32> to vector<256x128xf32>
    %27 = arith.addf %24, %26 : vector<256x128xf32>
    %cst_15 = arith.constant 0.000000e+00 : f32
    %28 = vector.broadcast %cst_15 : f32 to vector<256x128xf32>
    %29 = arith.maximumf %27, %28 : vector<256x128xf32>
    %30 = arith.truncf %29 : vector<256x128xf32> to vector<256x128xbf16>
    %c0_16 = arith.constant 0 : index
    %c0_17 = arith.constant 0 : index
    %31 = vector.load %arg7[%c0_16, %c0_17] : memref<128x64xbf16, #tpu.memory_space<vmem>>, vector<128x64xbf16>
    %cst_18 = arith.constant dense<0.000000e+00> : vector<256x64xf32>
    %32 = tpu.matmul %30, %31, %cst_18 {dimension_numbers = #tpu.dot_dimension_numbers<[1], [0], [0], [1], [0, 0, 1, 1], [], []>} : vector<256x128xbf16>, vector<128x64xbf16>, vector<256x64xf32> -> vector<256x64xf32>
    %c0_19 = arith.constant 0 : index
    %c0_20 = arith.constant 0 : index
    %33 = vector.load %arg8[%c0_19, %c0_20] : memref<1x64xf32, #tpu.memory_space<vmem>>, vector<1x64xf32>
    %34 = vector.broadcast %33 : vector<1x64xf32> to vector<256x64xf32>
    %35 = arith.addf %32, %34 : vector<256x64xf32>
    %cst_21 = arith.constant 0.000000e+00 : f32
    %36 = vector.broadcast %cst_21 : f32 to vector<256x64xf32>
    %37 = arith.maximumf %35, %36 : vector<256x64xf32>
    %c0_22 = arith.constant 0 : index
    %c0_23 = arith.constant 0 : index
    %38 = vector.load %arg9[%c0_22, %c0_23] : memref<1x64xbf16, #tpu.memory_space<vmem>>, vector<1x64xbf16>
    %39 = arith.truncf %37 : vector<256x64xf32> to vector<256x64xbf16>
    %cst_24 = arith.constant dense<0.000000e+00> : vector<1x256xf32>
    %40 = tpu.matmul %38, %39, %cst_24 {dimension_numbers = #tpu.dot_dimension_numbers<[1], [1], [0], [0], [0, 0, 1, 0], [], []>} : vector<1x64xbf16>, vector<256x64xbf16>, vector<1x256xf32> -> vector<1x256xf32>
    %c0_25 = arith.constant 0 : index
    %c0_26 = arith.constant 0 : index
    %41 = memref.load %arg10[%c0_25, %c0_26] : memref<1x1xf32, #tpu.memory_space<smem>>
    %42 = vector.broadcast %41 : f32 to vector<1x256xf32>
    %43 = arith.addf %40, %42 : vector<1x256xf32>
    %c0_27 = arith.constant 0 : index
    %c0_28 = arith.constant 0 : index
    %44 = vector.load %arg11[%c0_27, %c0_28] : memref<1x256xf32, #tpu.memory_space<vmem>>, vector<1x256xf32>
    tpu.vector_store %arg11[%c0_27, %c0_28], %43 {strides = array<i32>} : memref<1x256xf32, #tpu.memory_space<vmem>>, vector<1x256xf32>,
    return
  }
  func.func @transform_0(%arg0: i32) -> (i32, i32) {
    %c0_i32 = arith.constant 0 : i32
    %c0_i32_0 = arith.constant 0 : i32
    return %arg0, %c0_i32 : i32, i32
  }
  func.func @transform_1(%arg0: i32) -> (i32, i32) {
    %c0_i32 = arith.constant 0 : i32
    %c0_i32_0 = arith.constant 0 : i32
    %c0_i32_1 = arith.constant 0 : i32
    return %c0_i32, %c0_i32_0 : i32, i32
  }
  func.func @transform_2(%arg0: i32) -> (i32, i32) {
    %c0_i32 = arith.constant 0 : i32
    %c0_i32_0 = arith.constant 0 : i32
    %c0_i32_1 = arith.constant 0 : i32
    return %c0_i32, %c0_i32_0 : i32, i32
  }
  func.func @transform_3(%arg0: i32) -> (i32, i32) {
    %c0_i32 = arith.constant 0 : i32
    %c0_i32_0 = arith.constant 0 : i32
    %c0_i32_1 = arith.constant 0 : i32
    return %c0_i32, %c0_i32_0 : i32, i32
  }
  func.func @transform_4(%arg0: i32) -> (i32, i32) {
    %c0_i32 = arith.constant 0 : i32
    %c0_i32_0 = arith.constant 0 : i32
    %c0_i32_1 = arith.constant 0 : i32
    return %c0_i32, %c0_i32_0 : i32, i32
  }
  func.func @transform_5(%arg0: i32) -> (i32, i32) {
    %c0_i32 = arith.constant 0 : i32
    %c0_i32_0 = arith.constant 0 : i32
    %c0_i32_1 = arith.constant 0 : i32
    return %c0_i32, %c0_i32_0 : i32, i32
  }
  func.func @transform_6(%arg0: i32) -> (i32, i32) {
    %c0_i32 = arith.constant 0 : i32
    %c0_i32_0 = arith.constant 0 : i32
    %c0_i32_1 = arith.constant 0 : i32
    return %c0_i32, %c0_i32_0 : i32, i32
  }
  func.func @transform_7(%arg0: i32) -> (i32, i32) {
    %c0_i32 = arith.constant 0 : i32
    %c0_i32_0 = arith.constant 0 : i32
    %c0_i32_1 = arith.constant 0 : i32
    return %c0_i32, %c0_i32_0 : i32, i32
  }
  func.func @transform_8(%arg0: i32) -> (i32, i32) {
    %c0_i32 = arith.constant 0 : i32
    %c0_i32_0 = arith.constant 0 : i32
    %c0_i32_1 = arith.constant 0 : i32
    return %c0_i32, %c0_i32_0 : i32, i32
  }
  func.func @transform_9(%arg0: i32) -> (i32, i32) {
    %c0_i32 = arith.constant 0 : i32
    %c0_i32_0 = arith.constant 0 : i32
    %c0_i32_1 = arith.constant 0 : i32
    return %c0_i32, %c0_i32_0 : i32, i32
  }
  func.func @transform_10(%arg0: i32) -> (i32, i32) {
    %c0_i32 = arith.constant 0 : i32
    %c0_i32_0 = arith.constant 0 : i32
    return %arg0, %c0_i32 : i32, i32
  }
}

</mosaic_0001>

<llo_original>
// kernel: ncf_forward.1
$region0: #{ncf_forward.1}
  #allocation0 [shape = 'u32[]', space=smem, size = 0x4, offset = 0x4, fixed_abs, tag = 'smem constant byte address 0x4 - core index']
  #allocation1 [shape = 'u32[144,128]{1,0:T(1,128)}', space=vmem, size = 0x12000, scoped, tag = 'internal scratch']
  #allocation2 [shape = 'f32[1,1]{1,0:T(1,128)S(6)}', space=smem, size = 0x200, scoped, tag = 'scoped memory for ncf_forward.1']
  %s0 = inlined_call_operand.vmem [shape: s32[256,2], index: 0, kind: input, shape index: {}]
  %s1 = inlined_call_operand.vmem [shape: bf16[100,50], index: 1, kind: input, shape index: {}]
  %s2 = inlined_call_operand.vmem [shape: bf16[200,50], index: 2, kind: input, shape index: {}]
  %s3 = inlined_call_operand.vmem [shape: bf16[50,128], index: 3, kind: input, shape index: {}]
  %s4 = inlined_call_operand.vmem [shape: bf16[50,128], index: 4, kind: input, shape index: {}]
  %s5 = inlined_call_operand.vmem [shape: f32[1,128], index: 5, kind: input, shape index: {}]
  %s6 = inlined_call_operand.vmem [shape: bf16[128,64], index: 6, kind: input, shape index: {}]
  %s7 = inlined_call_operand.vmem [shape: f32[1,64], index: 7, kind: input, shape index: {}]
  %s8 = inlined_call_operand.vmem [shape: bf16[1,64], index: 8, kind: input, shape index: {}]
  %s9 = inlined_call_operand.<no memory space> [shape: f32[1,1], index: 9, kind: input, shape index: {}]
  %s10 = inlined_call_operand.vmem [shape: f32[1,256], index: 10, kind: output, shape index: {}]
  %s11 = sld [smem:[#allocation0]]
  $region50: #{ncf_forward.1} parent=0
    _
  %s13 = ssub.s32 1, %s11
  %s14 = scalar_select 0, %s13, %s11
  %15 = sst [smem:[#allocation2]] %s9
  // Predicated region
  $region2: #{ncf_forward.1} parent=0 // pred_check
    _
  $region3: #{ncf_forward.1} parent=0 // pred_check_branch
    %17 = sbr.rel (0) target = $region5
  $region4: #{ncf_forward.1} parent=0 // pred_region
    _
  $region5: #{ncf_forward.1} parent=0 // pred_fallthru
    _
  // Predicated region
  $region6: #{ncf_forward.1} parent=0 // pred_check
    _
  $region7: #{ncf_forward.1} parent=0 // pred_check_branch
    %19 = sbr.rel (0) target = $region9
  $region8: #{ncf_forward.1} parent=0 // pred_region
    _
  $region9: #{ncf_forward.1} parent=0 // pred_fallthru
    _
  // Predicated region
  $region10: #{ncf_forward.1} parent=0 // pred_check
    _
  $region11: #{ncf_forward.1} parent=0 // pred_check_branch
    %21 = sbr.rel (0) target = $region13
  $region12: #{ncf_forward.1} parent=0 // pred_region
    _
  $region13: #{ncf_forward.1} parent=0 // pred_fallthru
    _
  // Predicated region
  $region14: #{ncf_forward.1} parent=0 // pred_check
    _
  $region15: #{ncf_forward.1} parent=0 // pred_check_branch
    %23 = sbr.rel (0) target = $region17
  $region16: #{ncf_forward.1} parent=0 // pred_region
    _
  $region17: #{ncf_forward.1} parent=0 // pred_fallthru
    _
  // Predicated region
  $region18: #{ncf_forward.1} parent=0 // pred_check
    _
  $region19: #{ncf_forward.1} parent=0 // pred_check_branch
    %25 = sbr.rel (0) target = $region21
  $region20: #{ncf_forward.1} parent=0 // pred_region
    _
  $region21: #{ncf_forward.1} parent=0 // pred_fallthru
    _
  // Predicated region
  $region22: #{ncf_forward.1} parent=0 // pred_check
    _
  $region23: #{ncf_forward.1} parent=0 // pred_check_branch
    %27 = sbr.rel (0) target = $region25
  $region24: #{ncf_forward.1} parent=0 // pred_region
    _
  $region25: #{ncf_forward.1} parent=0 // pred_fallthru
    _
  // Predicated region
  $region26: #{ncf_forward.1} parent=0 // pred_check
    _
  $region27: #{ncf_forward.1} parent=0 // pred_check_branch
    %29 = sbr.rel (0) target = $region29
  $region28: #{ncf_forward.1} parent=0 // pred_region
    _
  $region29: #{ncf_forward.1} parent=0 // pred_fallthru
    _
  // Predicated region
  $region30: #{ncf_forward.1} parent=0 // pred_check
    _
  $region31: #{ncf_forward.1} parent=0 // pred_check_branch
    %31 = sbr.rel (0) target = $region33
  $region32: #{ncf_forward.1} parent=0 // pred_region
    _
  $region33: #{ncf_forward.1} parent=0 // pred_fallthru
    _
  // Predicated region
  $region34: #{ncf_forward.1} parent=0 // pred_check
    _
  $region35: #{ncf_forward.1} parent=0 // pred_check_branch
    %33 = sbr.rel (0) target = $region37
  $region36: #{ncf_forward.1} parent=0 // pred_region
    _
  $region37: #{ncf_forward.1} parent=0 // pred_fallthru
    _
  // Predicated region
  $region38: #{ncf_forward.1} parent=0 // pred_check
    _
  $region39: #{ncf_forward.1} parent=0 // pred_check_branch
    %35 = sbr.rel (0) target = $region41
  $region40: #{ncf_forward.1} parent=0 // pred_region
    _
  $region41: #{ncf_forward.1} parent=0 // pred_fallthru
    _
  %v37 = vld [vmem:[%s0] sm:$0xff]
  %v38 = vld [vmem:[%s0 + $0x8] sm:$0xff]
  %v39 = vld [vmem:[%s0 + $0x10] sm:$0xff]
  %v40 = vld [vmem:[%s0 + $0x18] sm:$0xff]
  %v41 = vld [vmem:[%s0 + $0x20] sm:$0xff]
  %v42 = vld [vmem:[%s0 + $0x28] sm:$0xff]
  %v43 = vld [vmem:[%s0 + $0x30] sm:$0xff]
  %v44 = vld [vmem:[%s0 + $0x38] sm:$0xff]
  %v45 = vld [vmem:[%s0 + $0x40] sm:$0xff]
  %v46 = vld [vmem:[%s0 + $0x48] sm:$0xff]
  %v47 = vld [vmem:[%s0 + $0x50] sm:$0xff]
  %v48 = vld [vmem:[%s0 + $0x58] sm:$0xff]
  %v49 = vld [vmem:[%s0 + $0x60] sm:$0xff]
  %v50 = vld [vmem:[%s0 + $0x68] sm:$0xff]
  %v51 = vld [vmem:[%s0 + $0x70] sm:$0xff]
  %v52 = vld [vmem:[%s0 + $0x78] sm:$0xff]
  %v53 = vld [vmem:[%s0 + $0x80] sm:$0xff]
  %v54 = vld [vmem:[%s0 + $0x88] sm:$0xff]
  %v55 = vld [vmem:[%s0 + $0x90] sm:$0xff]
  %v56 = vld [vmem:[%s0 + $0x98] sm:$0xff]
  %v57 = vld [vmem:[%s0 + $0xa0] sm:$0xff]
  %v58 = vld [vmem:[%s0 + $0xa8] sm:$0xff]
  %v59 = vld [vmem:[%s0 + $0xb0] sm:$0xff]
  %v60 = vld [vmem:[%s0 + $0xb8] sm:$0xff]
  %v61 = vld [vmem:[%s0 + $0xc0] sm:$0xff]
  %v62 = vld [vmem:[%s0 + $0xc8] sm:$0xff]
  %v63 = vld [vmem:[%s0 + $0xd0] sm:$0xff]
  %v64 = vld [vmem:[%s0 + $0xd8] sm:$0xff]
  %v65 = vld [vmem:[%s0 + $0xe0] sm:$0xff]
  %v66 = vld [vmem:[%s0 + $0xe8] sm:$0xff]
  %v67 = vld [vmem:[%s0 + $0xf0] sm:$0xff]
  %v68 = vld [vmem:[%s0 + $0xf8] sm:$0xff]
  %v69 = vlaneseq
  %v70 = vand.u32 %v69, 127
  %71 = vset.pattern.permute.xlu0 0
  %72 = vperm.xlu0 %71, %v37
  %v73 = vpop.permute.xlu0 %72
  %74 = vset.pattern.permute.xlu0 0
  %75 = vperm.xlu0 %74, %v38
  %v76 = vpop.permute.xlu0 %75
  %77 = vset.pattern.permute.xlu0 0
  %78 = vperm.xlu0 %77, %v39
  %v79 = vpop.permute.xlu0 %78
  %80 = vset.pattern.permute.xlu0 0
  %81 = vperm.xlu0 %80, %v40
  %v82 = vpop.permute.xlu0 %81
  %83 = vset.pattern.permute.xlu0 0
  %84 = vperm.xlu0 %83, %v41
  %v85 = vpop.permute.xlu0 %84
  %86 = vset.pattern.permute.xlu0 0
  %87 = vperm.xlu0 %86, %v42
  %v88 = vpop.permute.xlu0 %87
  %89 = vset.pattern.permute.xlu0 0
  %90 = vperm.xlu0 %89, %v43
  %v91 = vpop.permute.xlu0 %90
  %92 = vset.pattern.permute.xlu0 0
  %93 = vperm.xlu0 %92, %v44
  %v94 = vpop.permute.xlu0 %93
  %95 = vset.pattern.permute.xlu0 0
  %96 = vperm.xlu0 %95, %v45
  %v97 = vpop.permute.xlu0 %96
  %98 = vset.pattern.permute.xlu0 0
  %99 = vperm.xlu0 %98, %v46
  %v100 = vpop.permute.xlu0 %99
  %101 = vset.pattern.permute.xlu0 0
  %102 = vperm.xlu0 %101, %v47
  %v103 = vpop.permute.xlu0 %102
  %104 = vset.pattern.permute.xlu0 0
  %105 = vperm.xlu0 %104, %v48
  %v106 = vpop.permute.xlu0 %105
  %107 = vset.pattern.permute.xlu0 0
  %108 = vperm.xlu0 %107, %v49
  %v109 = vpop.permute.xlu0 %108
  %110 = vset.pattern.permute.xlu0 0
  %111 = vperm.xlu0 %110, %v50
  %v112 = vpop.permute.xlu0 %111
  %113 = vset.pattern.permute.xlu0 0
  %114 = vperm.xlu0 %113, %v51
  %v115 = vpop.permute.xlu0 %114
  %116 = vset.pattern.permute.xlu0 0
  %117 = vperm.xlu0 %116, %v52
  %v118 = vpop.permute.xlu0 %117
  %119 = vset.pattern.permute.xlu0 0
  %120 = vperm.xlu0 %119, %v53
  %v121 = vpop.permute.xlu0 %120
  %122 = vset.pattern.permute.xlu0 0
  %123 = vperm.xlu0 %122, %v54
  %v124 = vpop.permute.xlu0 %123
  %125 = vset.pattern.permute.xlu0 0
  %126 = vperm.xlu0 %125, %v55
  %v127 = vpop.permute.xlu0 %126
  %128 = vset.pattern.permute.xlu0 0
  %129 = vperm.xlu0 %128, %v56
  %v130 = vpop.permute.xlu0 %129
  %131 = vset.pattern.permute.xlu0 0
  %132 = vperm.xlu0 %131, %v57
  %v133 = vpop.permute.xlu0 %132
  %134 = vset.pattern.permute.xlu0 0
  %135 = vperm.xlu0 %134, %v58
  %v136 = vpop.permute.xlu0 %135
  %137 = vset.pattern.permute.xlu0 0
  %138 = vperm.xlu0 %137, %v59
  %v139 = vpop.permute.xlu0 %138
  %140 = vset.pattern.permute.xlu0 0
  %141 = vperm.xlu0 %140, %v60
  %v142 = vpop.permute.xlu0 %141
  %143 = vset.pattern.permute.xlu0 0
  %144 = vperm.xlu0 %143, %v61
  %v145 = vpop.permute.xlu0 %144
  %146 = vset.pattern.permute.xlu0 0
  %147 = vperm.xlu0 %146, %v62
  %v148 = vpop.permute.xlu0 %147
  %149 = vset.pattern.permute.xlu0 0
  %150 = vperm.xlu0 %149, %v63
  %v151 = vpop.permute.xlu0 %150
  %152 = vset.pattern.permute.xlu0 0
  %153 = vperm.xlu0 %152, %v64
  %v154 = vpop.permute.xlu0 %153
  %155 = vset.pattern.permute.xlu0 0
  %156 = vperm.xlu0 %155, %v65
  %v157 = vpop.permute.xlu0 %156
  %158 = vset.pattern.permute.xlu0 0
  %159 = vperm.xlu0 %158, %v66
  %v160 = vpop.permute.xlu0 %159
  %161 = vset.pattern.permute.xlu0 0
  %162 = vperm.xlu0 %161, %v67
  %v163 = vpop.permute.xlu0 %162
  %164 = vset.pattern.permute.xlu0 0
  %165 = vperm.xlu0 %164, %v68
  %v166 = vpop.permute.xlu0 %165
  %vm167 = vcmp.eq.s32.totalorder %v70, %v73
  %vm168 = vcmp.eq.s32.totalorder %v70, %v76
  %vm169 = vcmp.eq.s32.totalorder %v70, %v79
  %vm170 = vcmp.eq.s32.totalorder %v70, %v82
  %vm171 = vcmp.eq.s32.totalorder %v70, %v85
  %vm172 = vcmp.eq.s32.totalorder %v70, %v88
  %vm173 = vcmp.eq.s32.totalorder %v70, %v91
  %vm174 = vcmp.eq.s32.totalorder %v70, %v94
  %vm175 = vcmp.eq.s32.totalorder %v70, %v97
  %vm176 = vcmp.eq.s32.totalorder %v70, %v100
  %vm177 = vcmp.eq.s32.totalorder %v70, %v103
  %vm178 = vcmp.eq.s32.totalorder %v70, %v106
  %vm179 = vcmp.eq.s32.totalorder %v70, %v109
  %vm180 = vcmp.eq.s32.totalorder %v70, %v112
  %vm181 = vcmp.eq.s32.totalorder %v70, %v115
  %vm182 = vcmp.eq.s32.totalorder %v70, %v118
  %vm183 = vcmp.eq.s32.totalorder %v70, %v121
  %vm184 = vcmp.eq.s32.totalorder %v70, %v124
  %vm185 = vcmp.eq.s32.totalorder %v70, %v127
  %vm186 = vcmp.eq.s32.totalorder %v70, %v130
  %vm187 = vcmp.eq.s32.totalorder %v70, %v133
  %vm188 = vcmp.eq.s32.totalorder %v70, %v136
  %vm189 = vcmp.eq.s32.totalorder %v70, %v139
  %vm190 = vcmp.eq.s32.totalorder %v70, %v142
  %vm191 = vcmp.eq.s32.totalorder %v70, %v145
  %vm192 = vcmp.eq.s32.totalorder %v70, %v148
  %vm193 = vcmp.eq.s32.totalorder %v70, %v151
  %vm194 = vcmp.eq.s32.totalorder %v70, %v154
  %vm195 = vcmp.eq.s32.totalorder %v70, %v157
  %vm196 = vcmp.eq.s32.totalorder %v70, %v160
  %vm197 = vcmp.eq.s32.totalorder %v70, %v163
  %vm198 = vcmp.eq.s32.totalorder %v70, %v166
  %v199 = vsel %vm167, 1, 0
  %v200 = vsel %vm168, 1, 0
  %v201 = vsel %vm169, 1, 0
  %v202 = vsel %vm170, 1, 0
  %v203 = vsel %vm171, 1, 0
  %v204 = vsel %vm172, 1, 0
  %v205 = vsel %vm173, 1, 0
  %v206 = vsel %vm174, 1, 0
  %v207 = vsel %vm175, 1, 0
  %v208 = vsel %vm176, 1, 0
  %v209 = vsel %vm177, 1, 0
  %v210 = vsel %vm178, 1, 0
  %v211 = vsel %vm179, 1, 0
  %v212 = vsel %vm180, 1, 0
  %v213 = vsel %vm181, 1, 0
  %v214 = vsel %vm182, 1, 0
  %v215 = vsel %vm183, 1, 0
  %v216 = vsel %vm184, 1, 0
  %v217 = vsel %vm185, 1, 0
  %v218 = vsel %vm186, 1, 0
  %v219 = vsel %vm187, 1, 0
  %v220 = vsel %vm188, 1, 0
  %v221 = vsel %vm189, 1, 0
  %v222 = vsel %vm190, 1, 0
  %v223 = vsel %vm191, 1, 0
  %v224 = vsel %vm192, 1, 0
  %v225 = vsel %vm193, 1, 0
  %v226 = vsel %vm194, 1, 0
  %v227 = vsel %vm195, 1, 0
  %v228 = vsel %vm196, 1, 0
  %v229 = vsel %vm197, 1, 0
  %v230 = vsel %vm198, 1, 0
  %v231 = vcvt.s32.f32 %v199
  %v232 = vcvt.s32.f32 %v200
  %v233 = vcvt.s32.f32 %v201
  %v234 = vcvt.s32.f32 %v202
  %v235 = vcvt.s32.f32 %v203
  %v236 = vcvt.s32.f32 %v204
  %v237 = vcvt.s32.f32 %v205
  %v238 = vcvt.s32.f32 %v206
  %v239 = vcvt.s32.f32 %v207
  %v240 = vcvt.s32.f32 %v208
  %v241 = vcvt.s32.f32 %v209
  %v242 = vcvt.s32.f32 %v210
  %v243 = vcvt.s32.f32 %v211
  %v244 = vcvt.s32.f32 %v212
  %v245 = vcvt.s32.f32 %v213
  %v246 = vcvt.s32.f32 %v214
  %v247 = vcvt.s32.f32 %v215
  %v248 = vcvt.s32.f32 %v216
  %v249 = vcvt.s32.f32 %v217
  %v250 = vcvt.s32.f32 %v218
  %v251 = vcvt.s32.f32 %v219
  %v252 = vcvt.s32.f32 %v220
  %v253 = vcvt.s32.f32 %v221
  %v254 = vcvt.s32.f32 %v222
  %v255 = vcvt.s32.f32 %v223
  %v256 = vcvt.s32.f32 %v224
  %v257 = vcvt.s32.f32 %v225
  %v258 = vcvt.s32.f32 %v226
  %v259 = vcvt.s32.f32 %v227
  %v260 = vcvt.s32.f32 %v228
  %v261 = vcvt.s32.f32 %v229
  %v262 = vcvt.s32.f32 %v230
  %v263 = vpack.c.bf16 %v232, %v231
  %v264 = vpack.c.bf16 %v234, %v233
  %v265 = vpack.c.bf16 %v236, %v235
  %v266 = vpack.c.bf16 %v238, %v237
  %v267 = vpack.c.bf16 %v240, %v239
  %v268 = vpack.c.bf16 %v242, %v241
  %v269 = vpack.c.bf16 %v244, %v243
  %v270 = vpack.c.bf16 %v246, %v245
  %v271 = vpack.c.bf16 %v248, %v247
  %v272 = vpack.c.bf16 %v250, %v249
  %v273 = vpack.c.bf16 %v252, %v251
  %v274 = vpack.c.bf16 %v254, %v253
  %v275 = vpack.c.bf16 %v256, %v255
  %v276 = vpack.c.bf16 %v258, %v257
  %v277 = vpack.c.bf16 %v260, %v259
  %v278 = vpack.c.bf16 %v262, %v261
  %v279 = vadd.s32 %v70, 128
  %280 = vset.pattern.permute.xlu0 1
  %281 = vperm.xlu0 %280, %v37
  %v282 = vpop.permute.xlu0 %281
  %283 = vset.pattern.permute.xlu0 1
  %284 = vperm.xlu0 %283, %v38
  %v285 = vpop.permute.xlu0 %284
  %286 = vset.pattern.permute.xlu0 1
  %287 = vperm.xlu0 %286, %v39
  %v288 = vpop.permute.xlu0 %287
  %289 = vset.pattern.permute.xlu0 1
  %290 = vperm.xlu0 %289, %v40
  %v291 = vpop.permute.xlu0 %290
  %292 = vset.pattern.permute.xlu0 1
  %293 = vperm.xlu0 %292, %v41
  %v294 = vpop.permute.xlu0 %293
  %295 = vset.pattern.permute.xlu0 1
  %296 = vperm.xlu0 %295, %v42
  %v297 = vpop.permute.xlu0 %296
  %298 = vset.pattern.permute.xlu0 1
  %299 = vperm.xlu0 %298, %v43
  %v300 = vpop.permute.xlu0 %299
  %301 = vset.pattern.permute.xlu0 1
  %302 = vperm.xlu0 %301, %v44
  %v303 = vpop.permute.xlu0 %302
  %304 = vset.pattern.permute.xlu0 1
  %305 = vperm.xlu0 %304, %v45
  %v306 = vpop.permute.xlu0 %305
  %307 = vset.pattern.permute.xlu0 1
  %308 = vperm.xlu0 %307, %v46
  %v309 = vpop.permute.xlu0 %308
  %310 = vset.pattern.permute.xlu0 1
  %311 = vperm.xlu0 %310, %v47
  %v312 = vpop.permute.xlu0 %311
  %313 = vset.pattern.permute.xlu0 1
  %314 = vperm.xlu0 %313, %v48
  %v315 = vpop.permute.xlu0 %314
  %316 = vset.pattern.permute.xlu0 1
  %317 = vperm.xlu0 %316, %v49
  %v318 = vpop.permute.xlu0 %317
  %319 = vset.pattern.permute.xlu0 1
  %320 = vperm.xlu0 %319, %v50
  %v321 = vpop.permute.xlu0 %320
  %322 = vset.pattern.permute.xlu0 1
  %323 = vperm.xlu0 %322, %v51
  %v324 = vpop.permute.xlu0 %323
  %325 = vset.pattern.permute.xlu0 1
  %326 = vperm.xlu0 %325, %v52
  %v327 = vpop.permute.xlu0 %326
  %328 = vset.pattern.permute.xlu0 1
  %329 = vperm.xlu0 %328, %v53
  %v330 = vpop.permute.xlu0 %329
  %331 = vset.pattern.permute.xlu0 1
  %332 = vperm.xlu0 %331, %v54
  %v333 = vpop.permute.xlu0 %332
  %334 = vset.pattern.permute.xlu0 1
  %335 = vperm.xlu0 %334, %v55
  %v336 = vpop.permute.xlu0 %335
  %337 = vset.pattern.permute.xlu0 1
  %338 = vperm.xlu0 %337, %v56
  %v339 = vpop.permute.xlu0 %338
  %340 = vset.pattern.permute.xlu0 1
  %341 = vperm.xlu0 %340, %v57
  %v342 = vpop.permute.xlu0 %341
  %343 = vset.pattern.permute.xlu0 1
  %344 = vperm.xlu0 %343, %v58
  %v345 = vpop.permute.xlu0 %344
  %346 = vset.pattern.permute.xlu0 1
  %347 = vperm.xlu0 %346, %v59
  %v348 = vpop.permute.xlu0 %347
  %349 = vset.pattern.permute.xlu0 1
  %350 = vperm.xlu0 %349, %v60
  %v351 = vpop.permute.xlu0 %350
  %352 = vset.pattern.permute.xlu0 1
  %353 = vperm.xlu0 %352, %v61
  %v354 = vpop.permute.xlu0 %353
  %355 = vset.pattern.permute.xlu0 1
  %356 = vperm.xlu0 %355, %v62
  %v357 = vpop.permute.xlu0 %356
  %358 = vset.pattern.permute.xlu0 1
  %359 = vperm.xlu0 %358, %v63
  %v360 = vpop.permute.xlu0 %359
  %361 = vset.pattern.permute.xlu0 1
  %362 = vperm.xlu0 %361, %v64
  %v363 = vpop.permute.xlu0 %362
  %364 = vset.pattern.permute.xlu0 1
  %365 = vperm.xlu0 %364, %v65
  %v366 = vpop.permute.xlu0 %365
  %367 = vset.pattern.permute.xlu0 1
  %368 = vperm.xlu0 %367, %v66
  %v369 = vpop.permute.xlu0 %368
  %370 = vset.pattern.permute.xlu0 1
  %371 = vperm.xlu0 %370, %v67
  %v372 = vpop.permute.xlu0 %371
  %373 = vset.pattern.permute.xlu0 1
  %374 = vperm.xlu0 %373, %v68
  %v375 = vpop.permute.xlu0 %374
  %vm376 = vcmp.eq.s32.totalorder %v70, %v282
  %vm377 = vcmp.eq.s32.totalorder %v279, %v282
  %vm378 = vcmp.eq.s32.totalorder %v70, %v285
  %vm379 = vcmp.eq.s32.totalorder %v279, %v285
  %vm380 = vcmp.eq.s32.totalorder %v70, %v288
  %vm381 = vcmp.eq.s32.totalorder %v279, %v288
  %vm382 = vcmp.eq.s32.totalorder %v70, %v291
  %vm383 = vcmp.eq.s32.totalorder %v279, %v291
  %vm384 = vcmp.eq.s32.totalorder %v70, %v294
  %vm385 = vcmp.eq.s32.totalorder %v279, %v294
  %vm386 = vcmp.eq.s32.totalorder %v70, %v297
  %vm387 = vcmp.eq.s32.totalorder %v279, %v297
  %vm388 = vcmp.eq.s32.totalorder %v70, %v300
  %vm389 = vcmp.eq.s32.totalorder %v279, %v300
  %vm390 = vcmp.eq.s32.totalorder %v70, %v303
  %vm391 = vcmp.eq.s32.totalorder %v279, %v303
  %vm392 = vcmp.eq.s32.totalorder %v70, %v306
  %vm393 = vcmp.eq.s32.totalorder %v279, %v306
  %vm394 = vcmp.eq.s32.totalorder %v70, %v309
  %vm395 = vcmp.eq.s32.totalorder %v279, %v309
  %vm396 = vcmp.eq.s32.totalorder %v70, %v312
  %vm397 = vcmp.eq.s32.totalorder %v279, %v312
  %vm398 = vcmp.eq.s32.totalorder %v70, %v315
  %vm399 = vcmp.eq.s32.totalorder %v279, %v315
  %vm400 = vcmp.eq.s32.totalorder %v70, %v318
  %vm401 = vcmp.eq.s32.totalorder %v279, %v318
  %vm402 = vcmp.eq.s32.totalorder %v70, %v321
  %vm403 = vcmp.eq.s32.totalorder %v279, %v321
  %vm404 = vcmp.eq.s32.totalorder %v70, %v324
  %vm405 = vcmp.eq.s32.totalorder %v279, %v324
  %vm406 = vcmp.eq.s32.totalorder %v70, %v327
  %vm407 = vcmp.eq.s32.totalorder %v279, %v327
  %vm408 = vcmp.eq.s32.totalorder %v70, %v330
  %vm409 = vcmp.eq.s32.totalorder %v279, %v330
  %vm410 = vcmp.eq.s32.totalorder %v70, %v333
  %vm411 = vcmp.eq.s32.totalorder %v279, %v333
  %vm412 = vcmp.eq.s32.totalorder %v70, %v336
  %vm413 = vcmp.eq.s32.totalorder %v279, %v336
  %vm414 = vcmp.eq.s32.totalorder %v70, %v339
  %vm415 = vcmp.eq.s32.totalorder %v279, %v339
  %vm416 = vcmp.eq.s32.totalorder %v70, %v342
  %vm417 = vcmp.eq.s32.totalorder %v279, %v342
  %vm418 = vcmp.eq.s32.totalorder %v70, %v345
  %vm419 = vcmp.eq.s32.totalorder %v279, %v345
  %vm420 = vcmp.eq.s32.totalorder %v70, %v348
  %vm421 = vcmp.eq.s32.totalorder %v279, %v348
  %vm422 = vcmp.eq.s32.totalorder %v70, %v351
  %vm423 = vcmp.eq.s32.totalorder %v279, %v351
  %vm424 = vcmp.eq.s32.totalorder %v70, %v354
  %vm425 = vcmp.eq.s32.totalorder %v279, %v354
  %vm426 = vcmp.eq.s32.totalorder %v70, %v357
  %vm427 = vcmp.eq.s32.totalorder %v279, %v357
  %vm428 = vcmp.eq.s32.totalorder %v70, %v360
  %vm429 = vcmp.eq.s32.totalorder %v279, %v360
  %vm430 = vcmp.eq.s32.totalorder %v70, %v363
  %vm431 = vcmp.eq.s32.totalorder %v279, %v363
  %vm432 = vcmp.eq.s32.totalorder %v70, %v366
  %vm433 = vcmp.eq.s32.totalorder %v279, %v366
  %vm434 = vcmp.eq.s32.totalorder %v70, %v369
  %vm435 = vcmp.eq.s32.totalorder %v279, %v369
  %vm436 = vcmp.eq.s32.totalorder %v70, %v372
  %vm437 = vcmp.eq.s32.totalorder %v279, %v372
  %vm438 = vcmp.eq.s32.totalorder %v70, %v375
  %vm439 = vcmp.eq.s32.totalorder %v279, %v375
  %v440 = vsel %vm376, 1, 0
  %v441 = vsel %vm377, 1, 0
  %v442 = vsel %vm378, 1, 0
  %v443 = vsel %vm379, 1, 0
  %v444 = vsel %vm380, 1, 0
  %v445 = vsel %vm381, 1, 0
  %v446 = vsel %vm382, 1, 0
  %v447 = vsel %vm383, 1, 0
  %v448 = vsel %vm384, 1, 0
  %v449 = vsel %vm385, 1, 0
  %v450 = vsel %vm386, 1, 0
  %v451 = vsel %vm387, 1, 0
  %v452 = vsel %vm388, 1, 0
  %v453 = vsel %vm389, 1, 0
  %v454 = vsel %vm390, 1, 0
  %v455 = vsel %vm391, 1, 0
  %v456 = vsel %vm392, 1, 0
  %v457 = vsel %vm393, 1, 0
  %v458 = vsel %vm394, 1, 0
  %v459 = vsel %vm395, 1, 0
  %v460 = vsel %vm396, 1, 0
  %v461 = vsel %vm397, 1, 0
  %v462 = vsel %vm398, 1, 0
  %v463 = vsel %vm399, 1, 0
  %v464 = vsel %vm400, 1, 0
  %v465 = vsel %vm401, 1, 0
  %v466 = vsel %vm402, 1, 0
  %v467 = vsel %vm403, 1, 0
  %v468 = vsel %vm404, 1, 0
  %v469 = vsel %vm405, 1, 0
  %v470 = vsel %vm406, 1, 0
  %v471 = vsel %vm407, 1, 0
  %v472 = vsel %vm408, 1, 0
  %v473 = vsel %vm409, 1, 0
  %v474 = vsel %vm410, 1, 0
  %v475 = vsel %vm411, 1, 0
  %v476 = vsel %vm412, 1, 0
  %v477 = vsel %vm413, 1, 0
  %v478 = vsel %vm414, 1, 0
  %v479 = vsel %vm415, 1, 0
  %v480 = vsel %vm416, 1, 0
  %v481 = vsel %vm417, 1, 0
  %v482 = vsel %vm418, 1, 0
  %v483 = vsel %vm419, 1, 0
  %v484 = vsel %vm420, 1, 0
  %v485 = vsel %vm421, 1, 0
  %v486 = vsel %vm422, 1, 0
  %v487 = vsel %vm423, 1, 0
  %v488 = vsel %vm424, 1, 0
  %v489 = vsel %vm425, 1, 0
  %v490 = vsel %vm426, 1, 0
  %v491 = vsel %vm427, 1, 0
  %v492 = vsel %vm428, 1, 0
  %v493 = vsel %vm429, 1, 0
  %v494 = vsel %vm430, 1, 0
  %v495 = vsel %vm431, 1, 0
  %v496 = vsel %vm432, 1, 0
  %v497 = vsel %vm433, 1, 0
  %v498 = vsel %vm434, 1, 0
  %v499 = vsel %vm435, 1, 0
  %v500 = vsel %vm436, 1, 0
  %v501 = vsel %vm437, 1, 0
  %v502 = vsel %vm438, 1, 0
  %v503 = vsel %vm439, 1, 0
  %v504 = vcvt.s32.f32 %v440
  %v505 = vcvt.s32.f32 %v441
  %v506 = vcvt.s32.f32 %v442
  %v507 = vcvt.s32.f32 %v443
  %v508 = vcvt.s32.f32 %v444
  %v509 = vcvt.s32.f32 %v445
  %v510 = vcvt.s32.f32 %v446
  %v511 = vcvt.s32.f32 %v447
  %v512 = vcvt.s32.f32 %v448
  %v513 = vcvt.s32.f32 %v449
  %v514 = vcvt.s32.f32 %v450
  %v515 = vcvt.s32.f32 %v451
  %v516 = vcvt.s32.f32 %v452
  %v517 = vcvt.s32.f32 %v453
  %v518 = vcvt.s32.f32 %v454
  %v519 = vcvt.s32.f32 %v455
  %v520 = vcvt.s32.f32 %v456
  %v521 = vcvt.s32.f32 %v457
  %v522 = vcvt.s32.f32 %v458
  %v523 = vcvt.s32.f32 %v459
  %v524 = vcvt.s32.f32 %v460
  %v525 = vcvt.s32.f32 %v461
  %v526 = vcvt.s32.f32 %v462
  %v527 = vcvt.s32.f32 %v463
  %v528 = vcvt.s32.f32 %v464
  %v529 = vcvt.s32.f32 %v465
  %v530 = vcvt.s32.f32 %v466
  %v531 = vcvt.s32.f32 %v467
  %v532 = vcvt.s32.f32 %v468
  %v533 = vcvt.s32.f32 %v469
  %v534 = vcvt.s32.f32 %v470
  %v535 = vcvt.s32.f32 %v471
  %v536 = vcvt.s32.f32 %v472
  %v537 = vcvt.s32.f32 %v473
  %v538 = vcvt.s32.f32 %v474
  %v539 = vcvt.s32.f32 %v475
  %v540 = vcvt.s32.f32 %v476
  %v541 = vcvt.s32.f32 %v477
  %v542 = vcvt.s32.f32 %v478
  %v543 = vcvt.s32.f32 %v479
  %v544 = vcvt.s32.f32 %v480
  %v545 = vcvt.s32.f32 %v481
  %v546 = vcvt.s32.f32 %v482
  %v547 = vcvt.s32.f32 %v483
  %v548 = vcvt.s32.f32 %v484
  %v549 = vcvt.s32.f32 %v485
  %v550 = vcvt.s32.f32 %v486
  %v551 = vcvt.s32.f32 %v487
  %v552 = vcvt.s32.f32 %v488
  %v553 = vcvt.s32.f32 %v489
  %v554 = vcvt.s32.f32 %v490
  %v555 = vcvt.s32.f32 %v491
  %v556 = vcvt.s32.f32 %v492
  %v557 = vcvt.s32.f32 %v493
  %v558 = vcvt.s32.f32 %v494
  %v559 = vcvt.s32.f32 %v495
  %v560 = vcvt.s32.f32 %v496
  %v561 = vcvt.s32.f32 %v497
  %v562 = vcvt.s32.f32 %v498
  %v563 = vcvt.s32.f32 %v499
  %v564 = vcvt.s32.f32 %v500
  %v565 = vcvt.s32.f32 %v501
  %v566 = vcvt.s32.f32 %v502
  %v567 = vcvt.s32.f32 %v503
  %v568 = vpack.c.bf16 %v506, %v504
  %v569 = vpack.c.bf16 %v507, %v505
  %v570 = vpack.c.bf16 %v510, %v508
  %v571 = vpack.c.bf16 %v511, %v509
  %v572 = vpack.c.bf16 %v514, %v512
  %v573 = vpack.c.bf16 %v515, %v513
  %v574 = vpack.c.bf16 %v518, %v516
  %v575 = vpack.c.bf16 %v519, %v517
  %v576 = vpack.c.bf16 %v522, %v520
  %v577 = vpack.c.bf16 %v523, %v521
  %v578 = vpack.c.bf16 %v526, %v524
  %v579 = vpack.c.bf16 %v527, %v525
  %v580 = vpack.c.bf16 %v530, %v528
  %v581 = vpack.c.bf16 %v531, %v529
  %v582 = vpack.c.bf16 %v534, %v532
  %v583 = vpack.c.bf16 %v535, %v533
  %v584 = vpack.c.bf16 %v538, %v536
  %v585 = vpack.c.bf16 %v539, %v537
  %v586 = vpack.c.bf16 %v542, %v540
  %v587 = vpack.c.bf16 %v543, %v541
  %v588 = vpack.c.bf16 %v546, %v544
  %v589 = vpack.c.bf16 %v547, %v545
  %v590 = vpack.c.bf16 %v550, %v548
  %v591 = vpack.c.bf16 %v551, %v549
  %v592 = vpack.c.bf16 %v554, %v552
  %v593 = vpack.c.bf16 %v555, %v553
  %v594 = vpack.c.bf16 %v558, %v556
  %v595 = vpack.c.bf16 %v559, %v557
  %v596 = vpack.c.bf16 %v562, %v560
  %v597 = vpack.c.bf16 %v563, %v561
  %v598 = vpack.c.bf16 %v566, %v564
  %v599 = vpack.c.bf16 %v567, %v565
  %v600 = vld [vmem:[%s1] sm:$0xf]
  %v601 = vld [vmem:[%s1 + $0x4] sm:$0xf]
  %v602 = vld [vmem:[%s1 + $0x8] sm:$0xf]
  %v603 = vld [vmem:[%s1 + $0xc] sm:$0xf]
  %v604 = vld [vmem:[%s1 + $0x10] sm:$0xf]
  %v605 = vld [vmem:[%s1 + $0x14] sm:$0xf]
  %v606 = vld [vmem:[%s1 + $0x18] sm:$0xf]
  %v607 = vld [vmem:[%s1 + $0x1c] sm:$0xf]
  %v608 = vld [vmem:[%s1 + $0x20] sm:$0xf]
  %v609 = vld [vmem:[%s1 + $0x24] sm:$0xf]
  %v610 = vld [vmem:[%s1 + $0x28] sm:$0xf]
  %v611 = vld [vmem:[%s1 + $0x2c] sm:$0xf]
  %v612 = vld [vmem:[%s1 + $0x30] sm:$0x3]
  %v626 = vunpack.c.l.b16 %v600
  %v627 = vunpack.c.l.b16 %v601
  %v628 = vunpack.c.l.b16 %v602
  %v629 = vunpack.c.l.b16 %v603
  %v630 = vunpack.c.l.b16 %v604
  %v631 = vunpack.c.l.b16 %v605
  %v632 = vunpack.c.l.b16 %v606
  %v633 = vunpack.c.l.b16 %v607
  %v634 = vunpack.c.l.b16 %v608
  %v635 = vunpack.c.l.b16 %v609
  %v636 = vunpack.c.l.b16 %v610
  %v637 = vunpack.c.l.b16 %v611
  %v638 = vunpack.c.l.b16 %v612
  %v639 = vpack.c.b16 %v627, %v626
  %v640 = vpack.c.b16 %v629, %v628
  %v641 = vpack.c.b16 %v631, %v630
  %v642 = vpack.c.b16 %v633, %v632
  %v643 = vpack.c.b16 %v635, %v634
  %v644 = vpack.c.b16 %v637, %v636
  %v645 = vpack.c.b16 %v638, %v638
  %vm652 = vcmask 818176
  %v654 = vsel %vm652, %v263, 0
  %v657 = vsel %vm652, %v264, 0
  %v660 = vsel %vm652, %v265, 0
  %v663 = vsel %vm652, %v266, 0
  %v666 = vsel %vm652, %v267, 0
  %v669 = vsel %vm652, %v268, 0
  %v672 = vsel %vm652, %v269, 0
  %v675 = vsel %vm652, %v270, 0
  %v678 = vsel %vm652, %v271, 0
  %v681 = vsel %vm652, %v272, 0
  %v684 = vsel %vm652, %v273, 0
  %v687 = vsel %vm652, %v274, 0
  %v690 = vsel %vm652, %v275, 0
  %v693 = vsel %vm652, %v276, 0
  %v696 = vsel %vm652, %v277, 0
  %v699 = vsel %vm652, %v278, 0
  %vm701 = vcmask 1041408
  %v703 = vsel %vm701, %v645, 0
  %705 = vmatprep.subr.bf16.mxu0 0
  %706 = vmatpush1.bf16.msra.mxu0 %v639
  %707 = vmatprep.subr.bf16.mxu0 0
  %708 = vmatpush1.bf16.msra.mxu0 %v640
  %709 = vmatprep.subr.bf16.mxu0 0
  %710 = vmatpush1.bf16.msra.mxu0 %v641
  %711 = vmatprep.subr.bf16.mxu0 0
  %712 = vmatpush1.bf16.msra.mxu0 %v642
  %713 = vmatprep.subr.bf16.mxu0 0
  %714 = vmatpush1.bf16.msra.mxu0 %v643
  %715 = vmatprep.subr.bf16.mxu0 0
  %716 = vmatpush1.bf16.msra.mxu0 %v644
  %717 = vmatprep.subr.bf16.mxu0 0
  %718 = vmatpush1.bf16.msra.mxu0 %v703
  %719 = vmatprep.subr.bf16.mxu0 0
  %720 = vmatpush1.bf16.msra.mxu0 0
  %721 = vmatprep.subr.bf16.mxu0 0
  %722 = vmatpush1.bf16.msra.mxu0 0
  %723 = vmatprep.subr.bf16.mxu0 0
  %724 = vmatpush1.bf16.msra.mxu0 0
  %725 = vmatprep.subr.bf16.mxu0 0
  %726 = vmatpush1.bf16.msra.mxu0 0
  %727 = vmatprep.subr.bf16.mxu0 0
  %728 = vmatpush1.bf16.msra.mxu0 0
  %729 = vmatprep.subr.bf16.mxu0 0
  %730 = vmatpush1.bf16.msra.mxu0 0
  %731 = vmatprep.subr.bf16.mxu0 0
  %732 = vmatpush1.bf16.msra.mxu0 0
  %733 = vmatprep.subr.bf16.mxu0 0
  %734 = vmatpush1.bf16.msra.mxu0 0
  %735 = vmatprep.subr.bf16.mxu0 0
  %736 = vmatpush1.bf16.msra.mxu0 0
  %737 = vmatprep.mubr.bf16.mxu0 0
  %738 = vmatmul.mubr.bf16.gmra.mrb[0].mxu0 %v654
  %v739 = vpop.f32.mrb[0].mxu0
  %v740 = vadd.f32 0.0, %v739
  %v741 = vpop.f32.mrb[0].mxu0
  %v742 = vpop.f32.mrb[0].mxu0
  %v743 = vadd.f32 0.0, %v742
  %v744 = vpop.f32.mrb[0].mxu0
  %745 = vmatprep.mubr.bf16.mxu0 0
  %746 = vmatmul.mubr.bf16.gmra.mrb[0].mxu0 %v657
  %v747 = vpop.f32.mrb[0].mxu0
  %v748 = vadd.f32 0.0, %v747
  %v749 = vpop.f32.mrb[0].mxu0
  %v750 = vpop.f32.mrb[0].mxu0
  %v751 = vadd.f32 0.0, %v750
  %v752 = vpop.f32.mrb[0].mxu0
  %753 = vmatprep.mubr.bf16.mxu0 0
  %754 = vmatmul.mubr.bf16.gmra.mrb[0].mxu0 %v660
  %v755 = vpop.f32.mrb[0].mxu0
  %v756 = vadd.f32 0.0, %v755
  %v757 = vpop.f32.mrb[0].mxu0
  %v758 = vpop.f32.mrb[0].mxu0
  %v759 = vadd.f32 0.0, %v758
  %v760 = vpop.f32.mrb[0].mxu0
  %761 = vmatprep.mubr.bf16.mxu0 0
  %762 = vmatmul.mubr.bf16.gmra.mrb[0].mxu0 %v663
  %v763 = vpop.f32.mrb[0].mxu0
  %v764 = vadd.f32 0.0, %v763
  %v765 = vpop.f32.mrb[0].mxu0
  %v766 = vpop.f32.mrb[0].mxu0
  %v767 = vadd.f32 0.0, %v766
  %v768 = vpop.f32.mrb[0].mxu0
  %769 = vmatprep.mubr.bf16.mxu0 0
  %770 = vmatmul.mubr.bf16.gmra.mrb[0].mxu0 %v666
  %v771 = vpop.f32.mrb[0].mxu0
  %v772 = vadd.f32 0.0, %v771
  %v773 = vpop.f32.mrb[0].mxu0
  %v774 = vpop.f32.mrb[0].mxu0
  %v775 = vadd.f32 0.0, %v774
  %v776 = vpop.f32.mrb[0].mxu0
  %777 = vmatprep.mubr.bf16.mxu0 0
  %778 = vmatmul.mubr.bf16.gmra.mrb[0].mxu0 %v669
  %v779 = vpop.f32.mrb[0].mxu0
  %v780 = vadd.f32 0.0, %v779
  %v781 = vpop.f32.mrb[0].mxu0
  %v782 = vpop.f32.mrb[0].mxu0
  %v783 = vadd.f32 0.0, %v782
  %v784 = vpop.f32.mrb[0].mxu0
  %785 = vmatprep.mubr.bf16.mxu0 0
  %786 = vmatmul.mubr.bf16.gmra.mrb[0].mxu0 %v672
  %v787 = vpop.f32.mrb[0].mxu0
  %v788 = vadd.f32 0.0, %v787
  %v789 = vpop.f32.mrb[0].mxu0
  %v790 = vpop.f32.mrb[0].mxu0
  %v791 = vadd.f32 0.0, %v790
  %v792 = vpop.f32.mrb[0].mxu0
  %793 = vmatprep.mubr.bf16.mxu0 0
  %794 = vmatmul.mubr.bf16.gmra.mrb[0].mxu0 %v675
  %v795 = vpop.f32.mrb[0].mxu0
  %v796 = vadd.f32 0.0, %v795
  %v797 = vpop.f32.mrb[0].mxu0
  %v798 = vpop.f32.mrb[0].mxu0
  %v799 = vadd.f32 0.0, %v798
  %v800 = vpop.f32.mrb[0].mxu0
  %801 = vmatprep.mubr.bf16.mxu0 0
  %802 = vmatmul.mubr.bf16.gmra.mrb[0].mxu0 %v678
  %v803 = vpop.f32.mrb[0].mxu0
  %v804 = vadd.f32 0.0, %v803
  %v805 = vpop.f32.mrb[0].mxu0
  %v806 = vpop.f32.mrb[0].mxu0
  %v807 = vadd.f32 0.0, %v806
  %v808 = vpop.f32.mrb[0].mxu0
  %809 = vmatprep.mubr.bf16.mxu0 0
  %810 = vmatmul.mubr.bf16.gmra.mrb[0].mxu0 %v681
  %v811 = vpop.f32.mrb[0].mxu0
  %v812 = vadd.f32 0.0, %v811
  %v813 = vpop.f32.mrb[0].mxu0
  %v814 = vpop.f32.mrb[0].mxu0
  %v815 = vadd.f32 0.0, %v814
  %v816 = vpop.f32.mrb[0].mxu0
  %817 = vmatprep.mubr.bf16.mxu0 0
  %818 = vmatmul.mubr.bf16.gmra.mrb[0].mxu0 %v684
  %v819 = vpop.f32.mrb[0].mxu0
  %v820 = vadd.f32 0.0, %v819
  %v821 = vpop.f32.mrb[0].mxu0
  %v822 = vpop.f32.mrb[0].mxu0
  %v823 = vadd.f32 0.0, %v822
  %v824 = vpop.f32.mrb[0].mxu0
  %825 = vmatprep.mubr.bf16.mxu0 0
  %826 = vmatmul.mubr.bf16.gmra.mrb[0].mxu0 %v687
  %v827 = vpop.f32.mrb[0].mxu0
  %v828 = vadd.f32 0.0, %v827
  %v829 = vpop.f32.mrb[0].mxu0
  %v830 = vpop.f32.mrb[0].mxu0
  %v831 = vadd.f32 0.0, %v830
  %v832 = vpop.f32.mrb[0].mxu0
  %833 = vmatprep.mubr.bf16.mxu0 0
  %834 = vmatmul.mubr.bf16.gmra.mrb[0].mxu0 %v690
  %v835 = vpop.f32.mrb[0].mxu0
  %v836 = vadd.f32 0.0, %v835
  %v837 = vpop.f32.mrb[0].mxu0
  %v838 = vpop.f32.mrb[0].mxu0
  %v839 = vadd.f32 0.0, %v838
  %v840 = vpop.f32.mrb[0].mxu0
  %841 = vmatprep.mubr.bf16.mxu0 0
  %842 = vmatmul.mubr.bf16.gmra.mrb[0].mxu0 %v693
  %v843 = vpop.f32.mrb[0].mxu0
  %v844 = vadd.f32 0.0, %v843
  %v845 = vpop.f32.mrb[0].mxu0
  %v846 = vpop.f32.mrb[0].mxu0
  %v847 = vadd.f32 0.0, %v846
  %v848 = vpop.f32.mrb[0].mxu0
  %849 = vmatprep.mubr.bf16.mxu0 0
  %850 = vmatmul.mubr.bf16.gmra.mrb[0].mxu0 %v696
  %v851 = vpop.f32.mrb[0].mxu0
  %v852 = vadd.f32 0.0, %v851
  %v853 = vpop.f32.mrb[0].mxu0
  %v854 = vpop.f32.mrb[0].mxu0
  %v855 = vadd.f32 0.0, %v854
  %v856 = vpop.f32.mrb[0].mxu0
  %857 = vmatprep.mubr.bf16.mxu0 0
  %858 = vmatmul.mubr.bf16.gmra.mrb[0].mxu0 %v699
  %v859 = vpop.f32.mrb[0].mxu0
  %v860 = vadd.f32 0.0, %v859
  %v861 = vpop.f32.mrb[0].mxu0
  %v862 = vpop.f32.mrb[0].mxu0
  %v863 = vadd.f32 0.0, %v862
  %v864 = vpop.f32.mrb[0].mxu0
  %865 = vdwg.mxu0
  %v866 = vld [vmem:[%s2] sm:$0xf]
  %v867 = vld [vmem:[%s2 + $0x4] sm:$0xf]
  %v868 = vld [vmem:[%s2 + $0x8] sm:$0xf]
  %v869 = vld [vmem:[%s2 + $0xc] sm:$0xf]
  %v870 = vld [vmem:[%s2 + $0x10] sm:$0xf]
  %v871 = vld [vmem:[%s2 + $0x14] sm:$0xf]
  %v872 = vld [vmem:[%s2 + $0x18] sm:$0xf]
  %v873 = vld [vmem:[%s2 + $0x1c] sm:$0xf]
  %v874 = vld [vmem:[%s2 + $0x20] sm:$0xf]
  %v875 = vld [vmem:[%s2 + $0x24] sm:$0xf]
  %v876 = vld [vmem:[%s2 + $0x28] sm:$0xf]
  %v877 = vld [vmem:[%s2 + $0x2c] sm:$0xf]
  %v878 = vld [vmem:[%s2 + $0x30] sm:$0xf]
  %v879 = vld [vmem:[%s2 + $0x34] sm:$0xf]
  %v880 = vld [vmem:[%s2 + $0x38] sm:$0xf]
  %v881 = vld [vmem:[%s2 + $0x3c] sm:$0xf]
  %v882 = vld [vmem:[%s2 + $0x40] sm:$0xf]
  %v883 = vld [vmem:[%s2 + $0x44] sm:$0xf]
  %v884 = vld [vmem:[%s2 + $0x48] sm:$0xf]
  %v885 = vld [vmem:[%s2 + $0x4c] sm:$0xf]
  %v886 = vld [vmem:[%s2 + $0x50] sm:$0xf]
  %v887 = vld [vmem:[%s2 + $0x54] sm:$0xf]
  %v888 = vld [vmem:[%s2 + $0x58] sm:$0xf]
  %v889 = vld [vmem:[%s2 + $0x5c] sm:$0xf]
  %v890 = vld [vmem:[%s2 + $0x60] sm:$0xf]
  %v916 = vunpack.c.l.b16 %v866
  %v917 = vunpack.c.l.b16 %v867
  %v918 = vunpack.c.l.b16 %v868
  %v919 = vunpack.c.l.b16 %v869
  %v920 = vunpack.c.l.b16 %v870
  %v921 = vunpack.c.l.b16 %v871
  %v922 = vunpack.c.l.b16 %v872
  %v923 = vunpack.c.l.b16 %v873
  %v924 = vunpack.c.l.b16 %v874
  %v925 = vunpack.c.l.b16 %v875
  %v926 = vunpack.c.l.b16 %v876
  %v927 = vunpack.c.l.b16 %v877
  %v928 = vunpack.c.l.b16 %v878
  %v929 = vunpack.c.l.b16 %v879
  %v930 = vunpack.c.l.b16 %v880
  %v931 = vunpack.c.l.b16 %v881
  %v932 = vunpack.c.l.b16 %v882
  %v933 = vunpack.c.l.b16 %v883
  %v934 = vunpack.c.l.b16 %v884
  %v935 = vunpack.c.l.b16 %v885
  %v936 = vunpack.c.l.b16 %v886
  %v937 = vunpack.c.l.b16 %v887
  %v938 = vunpack.c.l.b16 %v888
  %v939 = vunpack.c.l.b16 %v889
  %v940 = vunpack.c.l.b16 %v890
  %v941 = vpack.c.b16 %v917, %v916
  %v942 = vpack.c.b16 %v919, %v918
  %v943 = vpack.c.b16 %v921, %v920
  %v944 = vpack.c.b16 %v923, %v922
  %v945 = vpack.c.b16 %v925, %v924
  %v946 = vpack.c.b16 %v927, %v926
  %v947 = vpack.c.b16 %v929, %v928
  %v948 = vpack.c.b16 %v931, %v930
  %v949 = vpack.c.b16 %v933, %v932
  %v950 = vpack.c.b16 %v935, %v934
  %v951 = vpack.c.b16 %v937, %v936
  %v952 = vpack.c.b16 %v939, %v938
  %v953 = vpack.c.b16 %v940, %v940
  %vm966 = vcmask 588800
  %v968 = vsel %vm966, %v569, 0
  %v971 = vsel %vm966, %v571, 0
  %v974 = vsel %vm966, %v573, 0
  %v977 = vsel %vm966, %v575, 0
  %v980 = vsel %vm966, %v577, 0
  %v983 = vsel %vm966, %v579, 0
  %v986 = vsel %vm966, %v581, 0
  %v989 = vsel %vm966, %v583, 0
  %v992 = vsel %vm966, %v585, 0
  %v995 = vsel %vm966, %v587, 0
  %v998 = vsel %vm966, %v589, 0
  %v1001 = vsel %vm966, %v591, 0
  %v1004 = vsel %vm966, %v593, 0
  %v1007 = vsel %vm966, %v595, 0
  %v1010 = vsel %vm966, %v597, 0
  %v1013 = vsel %vm966, %v599, 0
  %vm1015 = vcmask 1043456
  %v1017 = vsel %vm1015, %v953, 0
  %1019 = vmatprep.subr.bf16.mxu0 0
  %1020 = vmatpush1.bf16.msra.mxu0 %v941
  %1021 = vmatprep.subr.bf16.mxu0 0
  %1022 = vmatpush1.bf16.msra.mxu0 %v942
  %1023 = vmatprep.subr.bf16.mxu0 0
  %1024 = vmatpush1.bf16.msra.mxu0 %v943
  %1025 = vmatprep.subr.bf16.mxu0 0
  %1026 = vmatpush1.bf16.msra.mxu0 %v944
  %1027 = vmatprep.subr.bf16.mxu0 0
  %1028 = vmatpush1.bf16.msra.mxu0 %v945
  %1029 = vmatprep.subr.bf16.mxu0 0
  %1030 = vmatpush1.bf16.msra.mxu0 %v946
  %1031 = vmatprep.subr.bf16.mxu0 0
  %1032 = vmatpush1.bf16.msra.mxu0 %v947
  %1033 = vmatprep.subr.bf16.mxu0 0
  %1034 = vmatpush1.bf16.msra.mxu0 %v948
  %1035 = vmatprep.subr.bf16.mxu0 0
  %1036 = vmatpush1.bf16.msra.mxu0 %v949
  %1037 = vmatprep.subr.bf16.mxu0 0
  %1038 = vmatpush1.bf16.msra.mxu0 %v950
  %1039 = vmatprep.subr.bf16.mxu0 0
  %1040 = vmatpush1.bf16.msra.mxu0 %v951
  %1041 = vmatprep.subr.bf16.mxu0 0
  %1042 = vmatpush1.bf16.msra.mxu0 %v952
  %1043 = vmatprep.subr.bf16.mxu0 0
  %1044 = vmatpush1.bf16.msra.mxu0 %v1017
  %1045 = vmatprep.subr.bf16.mxu0 0
  %1046 = vmatpush1.bf16.msra.mxu0 0
  %1047 = vmatprep.subr.bf16.mxu0 0
  %1048 = vmatpush1.bf16.msra.mxu0 0
  %1049 = vmatprep.subr.bf16.mxu0 0
  %1050 = vmatpush1.bf16.msra.mxu0 0
  %1051 = vmatprep.mubr.bf16.mxu0 %v968
  %1052 = vmatmul.mubr.bf16.gmra.mrb[0].mxu0 %v568
  %v1053 = vpop.f32.mrb[0].mxu0
  %v1054 = vadd.f32 0.0, %v1053
  %v1055 = vpop.f32.mrb[0].mxu0
  %v1056 = vpop.f32.mrb[0].mxu0
  %v1057 = vadd.f32 0.0, %v1056
  %v1058 = vpop.f32.mrb[0].mxu0
  %1059 = vmatprep.mubr.bf16.mxu0 %v971
  %1060 = vmatmul.mubr.bf16.gmra.mrb[0].mxu0 %v570
  %v1061 = vpop.f32.mrb[0].mxu0
  %v1062 = vadd.f32 0.0, %v1061
  %v1063 = vpop.f32.mrb[0].mxu0
  %v1064 = vpop.f32.mrb[0].mxu0
  %v1065 = vadd.f32 0.0, %v1064
  %v1066 = vpop.f32.mrb[0].mxu0
  %1067 = vmatprep.mubr.bf16.mxu0 %v974
  %1068 = vmatmul.mubr.bf16.gmra.mrb[0].mxu0 %v572
  %v1069 = vpop.f32.mrb[0].mxu0
  %v1070 = vadd.f32 0.0, %v1069
  %v1071 = vpop.f32.mrb[0].mxu0
  %v1072 = vpop.f32.mrb[0].mxu0
  %v1073 = vadd.f32 0.0, %v1072
  %v1074 = vpop.f32.mrb[0].mxu0
  %1075 = vmatprep.mubr.bf16.mxu0 %v977
  %1076 = vmatmul.mubr.bf16.gmra.mrb[0].mxu0 %v574
  %v1077 = vpop.f32.mrb[0].mxu0
  %v1078 = vadd.f32 0.0, %v1077
  %v1079 = vpop.f32.mrb[0].mxu0
  %v1080 = vpop.f32.mrb[0].mxu0
  %v1081 = vadd.f32 0.0, %v1080
  %v1082 = vpop.f32.mrb[0].mxu0
  %1083 = vmatprep.mubr.bf16.mxu0 %v980
  %1084 = vmatmul.mubr.bf16.gmra.mrb[0].mxu0 %v576
  %v1085 = vpop.f32.mrb[0].mxu0
  %v1086 = vadd.f32 0.0, %v1085
  %v1087 = vpop.f32.mrb[0].mxu0
  %v1088 = vpop.f32.mrb[0].mxu0
  %v1089 = vadd.f32 0.0, %v1088
  %v1090 = vpop.f32.mrb[0].mxu0
  %1091 = vmatprep.mubr.bf16.mxu0 %v983
  %1092 = vmatmul.mubr.bf16.gmra.mrb[0].mxu0 %v578
  %v1093 = vpop.f32.mrb[0].mxu0
  %v1094 = vadd.f32 0.0, %v1093
  %v1095 = vpop.f32.mrb[0].mxu0
  %v1096 = vpop.f32.mrb[0].mxu0
  %v1097 = vadd.f32 0.0, %v1096
  %v1098 = vpop.f32.mrb[0].mxu0
  %1099 = vmatprep.mubr.bf16.mxu0 %v986
  %1100 = vmatmul.mubr.bf16.gmra.mrb[0].mxu0 %v580
  %v1101 = vpop.f32.mrb[0].mxu0
  %v1102 = vadd.f32 0.0, %v1101
  %v1103 = vpop.f32.mrb[0].mxu0
  %v1104 = vpop.f32.mrb[0].mxu0
  %v1105 = vadd.f32 0.0, %v1104
  %v1106 = vpop.f32.mrb[0].mxu0
  %1107 = vmatprep.mubr.bf16.mxu0 %v989
  %1108 = vmatmul.mubr.bf16.gmra.mrb[0].mxu0 %v582
  %v1109 = vpop.f32.mrb[0].mxu0
  %v1110 = vadd.f32 0.0, %v1109
  %v1111 = vpop.f32.mrb[0].mxu0
  %v1112 = vpop.f32.mrb[0].mxu0
  %v1113 = vadd.f32 0.0, %v1112
  %v1114 = vpop.f32.mrb[0].mxu0
  %1115 = vmatprep.mubr.bf16.mxu0 %v992
  %1116 = vmatmul.mubr.bf16.gmra.mrb[0].mxu0 %v584
  %v1117 = vpop.f32.mrb[0].mxu0
  %v1118 = vadd.f32 0.0, %v1117
  %v1119 = vpop.f32.mrb[0].mxu0
  %v1120 = vpop.f32.mrb[0].mxu0
  %v1121 = vadd.f32 0.0, %v1120
  %v1122 = vpop.f32.mrb[0].mxu0
  %1123 = vmatprep.mubr.bf16.mxu0 %v995
  %1124 = vmatmul.mubr.bf16.gmra.mrb[0].mxu0 %v586
  %v1125 = vpop.f32.mrb[0].mxu0
  %v1126 = vadd.f32 0.0, %v1125
  %v1127 = vpop.f32.mrb[0].mxu0
  %v1128 = vpop.f32.mrb[0].mxu0
  %v1129 = vadd.f32 0.0, %v1128
  %v1130 = vpop.f32.mrb[0].mxu0
  %1131 = vmatprep.mubr.bf16.mxu0 %v998
  %1132 = vmatmul.mubr.bf16.gmra.mrb[0].mxu0 %v588
  %v1133 = vpop.f32.mrb[0].mxu0
  %v1134 = vadd.f32 0.0, %v1133
  %v1135 = vpop.f32.mrb[0].mxu0
  %v1136 = vpop.f32.mrb[0].mxu0
  %v1137 = vadd.f32 0.0, %v1136
  %v1138 = vpop.f32.mrb[0].mxu0
  %1139 = vmatprep.mubr.bf16.mxu0 %v1001
  %1140 = vmatmul.mubr.bf16.gmra.mrb[0].mxu0 %v590
  %v1141 = vpop.f32.mrb[0].mxu0
  %v1142 = vadd.f32 0.0, %v1141
  %v1143 = vpop.f32.mrb[0].mxu0
  %v1144 = vpop.f32.mrb[0].mxu0
  %v1145 = vadd.f32 0.0, %v1144
  %v1146 = vpop.f32.mrb[0].mxu0
  %1147 = vmatprep.mubr.bf16.mxu0 %v1004
  %1148 = vmatmul.mubr.bf16.gmra.mrb[0].mxu0 %v592
  %v1149 = vpop.f32.mrb[0].mxu0
  %v1150 = vadd.f32 0.0, %v1149
  %v1151 = vpop.f32.mrb[0].mxu0
  %v1152 = vpop.f32.mrb[0].mxu0
  %v1153 = vadd.f32 0.0, %v1152
  %v1154 = vpop.f32.mrb[0].mxu0
  %1155 = vmatprep.mubr.bf16.mxu0 %v1007
  %1156 = vmatmul.mubr.bf16.gmra.mrb[0].mxu0 %v594
  %v1157 = vpop.f32.mrb[0].mxu0
  %v1158 = vadd.f32 0.0, %v1157
  %v1159 = vpop.f32.mrb[0].mxu0
  %v1160 = vpop.f32.mrb[0].mxu0
  %v1161 = vadd.f32 0.0, %v1160
  %v1162 = vpop.f32.mrb[0].mxu0
  %1163 = vmatprep.mubr.bf16.mxu0 %v1010
  %1164 = vmatmul.mubr.bf16.gmra.mrb[0].mxu0 %v596
  %v1165 = vpop.f32.mrb[0].mxu0
  %v1166 = vadd.f32 0.0, %v1165
  %v1167 = vpop.f32.mrb[0].mxu0
  %v1168 = vpop.f32.mrb[0].mxu0
  %v1169 = vadd.f32 0.0, %v1168
  %v1170 = vpop.f32.mrb[0].mxu0
  %1171 = vmatprep.mubr.bf16.mxu0 %v1013
  %1172 = vmatmul.mubr.bf16.gmra.mrb[0].mxu0 %v598
  %v1173 = vpop.f32.mrb[0].mxu0
  %v1174 = vadd.f32 0.0, %v1173
  %v1175 = vpop.f32.mrb[0].mxu0
  %v1176 = vpop.f32.mrb[0].mxu0
  %v1177 = vadd.f32 0.0, %v1176
  %v1178 = vpop.f32.mrb[0].mxu0
  %1179 = vdwg.mxu0
  %v1180 = vpack.c.bf16 %v743, %v740
  %v1181 = vpack.c.bf16 %v751, %v748
  %v1182 = vpack.c.bf16 %v759, %v756
  %v1183 = vpack.c.bf16 %v767, %v764
  %v1184 = vpack.c.bf16 %v775, %v772
  %v1185 = vpack.c.bf16 %v783, %v780
  %v1186 = vpack.c.bf16 %v791, %v788
  %v1187 = vpack.c.bf16 %v799, %v796
  %v1188 = vpack.c.bf16 %v807, %v804
  %v1189 = vpack.c.bf16 %v815, %v812
  %v1190 = vpack.c.bf16 %v823, %v820
  %v1191 = vpack.c.bf16 %v831, %v828
  %v1192 = vpack.c.bf16 %v839, %v836
  %v1193 = vpack.c.bf16 %v847, %v844
  %v1194 = vpack.c.bf16 %v855, %v852
  %v1195 = vpack.c.bf16 %v863, %v860
  %v1196 = vld [vmem:[%s3] sm:$0xf]
  %v1197 = vld [vmem:[%s3 + $0x4] sm:$0xf]
  %v1198 = vld [vmem:[%s3 + $0x8] sm:$0xf]
  %v1199 = vld [vmem:[%s3 + $0xc] sm:$0xf]
  %v1200 = vld [vmem:[%s3 + $0x10] sm:$0xf]
  %v1201 = vld [vmem:[%s3 + $0x14] sm:$0xf]
  %v1202 = vld [vmem:[%s3 + $0x18] sm:$0x1]
  %v1203 = vpack.c.bf16 %v1057, %v1054
  %v1204 = vpack.c.bf16 %v1065, %v1062
  %v1205 = vpack.c.bf16 %v1073, %v1070
  %v1206 = vpack.c.bf16 %v1081, %v1078
  %v1207 = vpack.c.bf16 %v1089, %v1086
  %v1208 = vpack.c.bf16 %v1097, %v1094
  %v1209 = vpack.c.bf16 %v1105, %v1102
  %v1210 = vpack.c.bf16 %v1113, %v1110
  %v1211 = vpack.c.bf16 %v1121, %v1118
  %v1212 = vpack.c.bf16 %v1129, %v1126
  %v1213 = vpack.c.bf16 %v1137, %v1134
  %v1214 = vpack.c.bf16 %v1145, %v1142
  %v1215 = vpack.c.bf16 %v1153, %v1150
  %v1216 = vpack.c.bf16 %v1161, %v1158
  %v1217 = vpack.c.bf16 %v1169, %v1166
  %v1218 = vpack.c.bf16 %v1177, %v1174
  %v1219 = vld [vmem:[%s4] sm:$0xf]
  %v1220 = vld [vmem:[%s4 + $0x4] sm:$0xf]
  %v1221 = vld [vmem:[%s4 + $0x8] sm:$0xf]
  %v1222 = vld [vmem:[%s4 + $0xc] sm:$0xf]
  %v1223 = vld [vmem:[%s4 + $0x10] sm:$0xf]
  %v1224 = vld [vmem:[%s4 + $0x14] sm:$0xf]
  %v1225 = vld [vmem:[%s4 + $0x18] sm:$0x1]
  %v1233 = vunpack.c.l.b16 %v1219
  %v1234 = vunpack.c.l.b16 %v1220
  %v1235 = vunpack.c.l.b16 %v1221
  %v1236 = vunpack.c.l.b16 %v1222
  %v1237 = vunpack.c.l.b16 %v1223
  %v1238 = vunpack.c.l.b16 %v1224
  %v1239 = vunpack.c.l.b16 %v1225
  %v1240 = vpack.c.b16 %v1234, %v1233
  %v1241 = vpack.c.b16 %v1236, %v1235
  %v1242 = vpack.c.b16 %v1238, %v1237
  %v1243 = vpack.c.b16 %v1239, %v1239
  %vm1247 = vcmask 408576
  %v1249 = vsel %vm1247, %v1203, 0
  %v1252 = vsel %vm1247, %v1204, 0
  %v1255 = vsel %vm1247, %v1205, 0
  %v1258 = vsel %vm1247, %v1206, 0
  %v1261 = vsel %vm1247, %v1207, 0
  %v1264 = vsel %vm1247, %v1208, 0
  %v1267 = vsel %vm1247, %v1209, 0
  %v1270 = vsel %vm1247, %v1210, 0
  %v1273 = vsel %vm1247, %v1211, 0
  %v1276 = vsel %vm1247, %v1212, 0
  %v1279 = vsel %vm1247, %v1213, 0
  %v1282 = vsel %vm1247, %v1214, 0
  %v1285 = vsel %vm1247, %v1215, 0
  %v1288 = vsel %vm1247, %v1216, 0
  %v1291 = vsel %vm1247, %v1217, 0
  %v1294 = vsel %vm1247, %v1218, 0
  %vm1296 = vcmask 1040384
  %v1298 = vsel %vm1296, %v1243, 0
  %1300 = vmatprep.subr.bf16.mxu0 0
  %1301 = vmatpush1.bf16.msra.mxu0 %v1240
  %1302 = vmatprep.subr.bf16.mxu0 0
  %1303 = vmatpush1.bf16.msra.mxu0 %v1241
  %1304 = vmatprep.subr.bf16.mxu0 0
  %1305 = vmatpush1.bf16.msra.mxu0 %v1242
  %1306 = vmatprep.subr.bf16.mxu0 0
  %1307 = vmatpush1.bf16.msra.mxu0 %v1298
  %1308 = vmatprep.subr.bf16.mxu0 0
  %1309 = vmatpush1.bf16.msra.mxu0 0
  %1310 = vmatprep.subr.bf16.mxu0 0
  %1311 = vmatpush1.bf16.msra.mxu0 0
  %1312 = vmatprep.subr.bf16.mxu0 0
  %1313 = vmatpush1.bf16.msra.mxu0 0
  %1314 = vmatprep.subr.bf16.mxu0 0
  %1315 = vmatpush1.bf16.msra.mxu0 0
  %1316 = vmatprep.subr.bf16.mxu0 0
  %1317 = vmatpush1.bf16.msra.mxu0 0
  %1318 = vmatprep.subr.bf16.mxu0 0
  %1319 = vmatpush1.bf16.msra.mxu0 0
  %1320 = vmatprep.subr.bf16.mxu0 0
  %1321 = vmatpush1.bf16.msra.mxu0 0
  %1322 = vmatprep.subr.bf16.mxu0 0
  %1323 = vmatpush1.bf16.msra.mxu0 0
  %1324 = vmatprep.subr.bf16.mxu0 0
  %1325 = vmatpush1.bf16.msra.mxu0 0
  %1326 = vmatprep.subr.bf16.mxu0 0
  %1327 = vmatpush1.bf16.msra.mxu0 0
  %1328 = vmatprep.subr.bf16.mxu0 0
  %1329 = vmatpush1.bf16.msra.mxu0 0
  %1330 = vmatprep.subr.bf16.mxu0 0
  %1331 = vmatpush1.bf16.msra.mxu0 0
  %1332 = vmatprep.mubr.bf16.mxu0 0
  %1333 = vmatmul.mubr.bf16.gmra.mrb[0].mxu0 %v1249
  %v1334 = vpop.f32.mrb[0].mxu0
  %v1335 = vadd.f32 0.0, %v1334
  %v1336 = vpop.f32.mrb[0].mxu0
  %v1337 = vpop.f32.mrb[0].mxu0
  %v1338 = vadd.f32 0.0, %v1337
  %v1339 = vpop.f32.mrb[0].mxu0
  %1340 = vmatprep.mubr.bf16.mxu0 0
  %1341 = vmatmul.mubr.bf16.gmra.mrb[0].mxu0 %v1252
  %v1342 = vpop.f32.mrb[0].mxu0
  %v1343 = vadd.f32 0.0, %v1342
  %v1344 = vpop.f32.mrb[0].mxu0
  %v1345 = vpop.f32.mrb[0].mxu0
  %v1346 = vadd.f32 0.0, %v1345
  %v1347 = vpop.f32.mrb[0].mxu0
  %1348 = vmatprep.mubr.bf16.mxu0 0
  %1349 = vmatmul.mubr.bf16.gmra.mrb[0].mxu0 %v1255
  %v1350 = vpop.f32.mrb[0].mxu0
  %v1351 = vadd.f32 0.0, %v1350
  %v1352 = vpop.f32.mrb[0].mxu0
  %v1353 = vpop.f32.mrb[0].mxu0
  %v1354 = vadd.f32 0.0, %v1353
  %v1355 = vpop.f32.mrb[0].mxu0
  %1356 = vmatprep.mubr.bf16.mxu0 0
  %1357 = vmatmul.mubr.bf16.gmra.mrb[0].mxu0 %v1258
  %v1358 = vpop.f32.mrb[0].mxu0
  %v1359 = vadd.f32 0.0, %v1358
  %v1360 = vpop.f32.mrb[0].mxu0
  %v1361 = vpop.f32.mrb[0].mxu0
  %v1362 = vadd.f32 0.0, %v1361
  %v1363 = vpop.f32.mrb[0].mxu0
  %1364 = vmatprep.mubr.bf16.mxu0 0
  %1365 = vmatmul.mubr.bf16.gmra.mrb[0].mxu0 %v1261
  %v1366 = vpop.f32.mrb[0].mxu0
  %v1367 = vadd.f32 0.0, %v1366
  %v1368 = vpop.f32.mrb[0].mxu0
  %v1369 = vpop.f32.mrb[0].mxu0
  %v1370 = vadd.f32 0.0, %v1369
  %v1371 = vpop.f32.mrb[0].mxu0
  %1372 = vmatprep.mubr.bf16.mxu0 0
  %1373 = vmatmul.mubr.bf16.gmra.mrb[0].mxu0 %v1264
  %v1374 = vpop.f32.mrb[0].mxu0
  %v1375 = vadd.f32 0.0, %v1374
  %v1376 = vpop.f32.mrb[0].mxu0
  %v1377 = vpop.f32.mrb[0].mxu0
  %v1378 = vadd.f32 0.0, %v1377
  %v1379 = vpop.f32.mrb[0].mxu0
  %1380 = vmatprep.mubr.bf16.mxu0 0
  %1381 = vmatmul.mubr.bf16.gmra.mrb[0].mxu0 %v1267
  %v1382 = vpop.f32.mrb[0].mxu0
  %v1383 = vadd.f32 0.0, %v1382
  %v1384 = vpop.f32.mrb[0].mxu0
  %v1385 = vpop.f32.mrb[0].mxu0
  %v1386 = vadd.f32 0.0, %v1385
  %v1387 = vpop.f32.mrb[0].mxu0
  %1388 = vmatprep.mubr.bf16.mxu0 0
  %1389 = vmatmul.mubr.bf16.gmra.mrb[0].mxu0 %v1270
  %v1390 = vpop.f32.mrb[0].mxu0
  %v1391 = vadd.f32 0.0, %v1390
  %v1392 = vpop.f32.mrb[0].mxu0
  %v1393 = vpop.f32.mrb[0].mxu0
  %v1394 = vadd.f32 0.0, %v1393
  %v1395 = vpop.f32.mrb[0].mxu0
  %1396 = vmatprep.mubr.bf16.mxu0 0
  %1397 = vmatmul.mubr.bf16.gmra.mrb[0].mxu0 %v1273
  %v1398 = vpop.f32.mrb[0].mxu0
  %v1399 = vadd.f32 0.0, %v1398
  %v1400 = vpop.f32.mrb[0].mxu0
  %v1401 = vpop.f32.mrb[0].mxu0
  %v1402 = vadd.f32 0.0, %v1401
  %v1403 = vpop.f32.mrb[0].mxu0
  %1404 = vmatprep.mubr.bf16.mxu0 0
  %1405 = vmatmul.mubr.bf16.gmra.mrb[0].mxu0 %v1276
  %v1406 = vpop.f32.mrb[0].mxu0
  %v1407 = vadd.f32 0.0, %v1406
  %v1408 = vpop.f32.mrb[0].mxu0
  %v1409 = vpop.f32.mrb[0].mxu0
  %v1410 = vadd.f32 0.0, %v1409
  %v1411 = vpop.f32.mrb[0].mxu0
  %1412 = vmatprep.mubr.bf16.mxu0 0
  %1413 = vmatmul.mubr.bf16.gmra.mrb[0].mxu0 %v1279
  %v1414 = vpop.f32.mrb[0].mxu0
  %v1415 = vadd.f32 0.0, %v1414
  %v1416 = vpop.f32.mrb[0].mxu0
  %v1417 = vpop.f32.mrb[0].mxu0
  %v1418 = vadd.f32 0.0, %v1417
  %v1419 = vpop.f32.mrb[0].mxu0
  %1420 = vmatprep.mubr.bf16.mxu0 0
  %1421 = vmatmul.mubr.bf16.gmra.mrb[0].mxu0 %v1282
  %v1422 = vpop.f32.mrb[0].mxu0
  %v1423 = vadd.f32 0.0, %v1422
  %v1424 = vpop.f32.mrb[0].mxu0
  %v1425 = vpop.f32.mrb[0].mxu0
  %v1426 = vadd.f32 0.0, %v1425
  %v1427 = vpop.f32.mrb[0].mxu0
  %1428 = vmatprep.mubr.bf16.mxu0 0
  %1429 = vmatmul.mubr.bf16.gmra.mrb[0].mxu0 %v1285
  %v1430 = vpop.f32.mrb[0].mxu0
  %v1431 = vadd.f32 0.0, %v1430
  %v1432 = vpop.f32.mrb[0].mxu0
  %v1433 = vpop.f32.mrb[0].mxu0
  %v1434 = vadd.f32 0.0, %v1433
  %v1435 = vpop.f32.mrb[0].mxu0
  %1436 = vmatprep.mubr.bf16.mxu0 0
  %1437 = vmatmul.mubr.bf16.gmra.mrb[0].mxu0 %v1288
  %v1438 = vpop.f32.mrb[0].mxu0
  %v1439 = vadd.f32 0.0, %v1438
  %v1440 = vpop.f32.mrb[0].mxu0
  %v1441 = vpop.f32.mrb[0].mxu0
  %v1442 = vadd.f32 0.0, %v1441
  %v1443 = vpop.f32.mrb[0].mxu0
  %1444 = vmatprep.mubr.bf16.mxu0 0
  %1445 = vmatmul.mubr.bf16.gmra.mrb[0].mxu0 %v1291
  %v1446 = vpop.f32.mrb[0].mxu0
  %v1447 = vadd.f32 0.0, %v1446
  %v1448 = vpop.f32.mrb[0].mxu0
  %v1449 = vpop.f32.mrb[0].mxu0
  %v1450 = vadd.f32 0.0, %v1449
  %v1451 = vpop.f32.mrb[0].mxu0
  %1452 = vmatprep.mubr.bf16.mxu0 0
  %1453 = vmatmul.mubr.bf16.gmra.mrb[0].mxu0 %v1294
  %v1454 = vpop.f32.mrb[0].mxu0
  %v1455 = vadd.f32 0.0, %v1454
  %v1456 = vpop.f32.mrb[0].mxu0
  %v1457 = vpop.f32.mrb[0].mxu0
  %v1458 = vadd.f32 0.0, %v1457
  %v1459 = vpop.f32.mrb[0].mxu0
  %1460 = vdwg.mxu0
  %v1468 = vunpack.c.l.b16 %v1196
  %v1469 = vunpack.c.l.b16 %v1197
  %v1470 = vunpack.c.l.b16 %v1198
  %v1471 = vunpack.c.l.b16 %v1199
  %v1472 = vunpack.c.l.b16 %v1200
  %v1473 = vunpack.c.l.b16 %v1201
  %v1474 = vunpack.c.l.b16 %v1202
  %v1475 = vpack.c.b16 %v1469, %v1468
  %v1476 = vpack.c.b16 %v1471, %v1470
  %v1477 = vpack.c.b16 %v1473, %v1472
  %v1478 = vpack.c.b16 %v1474, %v1474
  %v1483 = vsel %vm1247, %v1180, 0
  %v1486 = vsel %vm1247, %v1181, 0
  %v1489 = vsel %vm1247, %v1182, 0
  %v1492 = vsel %vm1247, %v1183, 0
  %v1495 = vsel %vm1247, %v1184, 0
  %v1498 = vsel %vm1247, %v1185, 0
  %v1501 = vsel %vm1247, %v1186, 0
  %v1504 = vsel %vm1247, %v1187, 0
  %v1507 = vsel %vm1247, %v1188, 0
  %v1510 = vsel %vm1247, %v1189, 0
  %v1513 = vsel %vm1247, %v1190, 0
  %v1516 = vsel %vm1247, %v1191, 0
  %v1519 = vsel %vm1247, %v1192, 0
  %v1522 = vsel %vm1247, %v1193, 0
  %v1525 = vsel %vm1247, %v1194, 0
  %v1528 = vsel %vm1247, %v1195, 0
  %v1531 = vsel %vm1296, %v1478, 0
  %1533 = vmatprep.subr.bf16.mxu0 0
  %1534 = vmatpush1.bf16.msra.mxu0 %v1475
  %1535 = vmatprep.subr.bf16.mxu0 0
  %1536 = vmatpush1.bf16.msra.mxu0 %v1476
  %1537 = vmatprep.subr.bf16.mxu0 0
  %1538 = vmatpush1.bf16.msra.mxu0 %v1477
  %1539 = vmatprep.subr.bf16.mxu0 0
  %1540 = vmatpush1.bf16.msra.mxu0 %v1531
  %1541 = vmatprep.subr.bf16.mxu0 0
  %1542 = vmatpush1.bf16.msra.mxu0 0
  %1543 = vmatprep.subr.bf16.mxu0 0
  %1544 = vmatpush1.bf16.msra.mxu0 0
  %1545 = vmatprep.subr.bf16.mxu0 0
  %1546 = vmatpush1.bf16.msra.mxu0 0
  %1547 = vmatprep.subr.bf16.mxu0 0
  %1548 = vmatpush1.bf16.msra.mxu0 0
  %1549 = vmatprep.subr.bf16.mxu0 0
  %1550 = vmatpush1.bf16.msra.mxu0 0
  %1551 = vmatprep.subr.bf16.mxu0 0
  %1552 = vmatpush1.bf16.msra.mxu0 0
  %1553 = vmatprep.subr.bf16.mxu0 0
  %1554 = vmatpush1.bf16.msra.mxu0 0
  %1555 = vmatprep.subr.bf16.mxu0 0
  %1556 = vmatpush1.bf16.msra.mxu0 0
  %1557 = vmatprep.subr.bf16.mxu0 0
  %1558 = vmatpush1.bf16.msra.mxu0 0
  %1559 = vmatprep.subr.bf16.mxu0 0
  %1560 = vmatpush1.bf16.msra.mxu0 0
  %1561 = vmatprep.subr.bf16.mxu0 0
  %1562 = vmatpush1.bf16.msra.mxu0 0
  %1563 = vmatprep.subr.bf16.mxu0 0
  %1564 = vmatpush1.bf16.msra.mxu0 0
  %1565 = vmatprep.mubr.bf16.mxu0 0
  %1566 = vmatmul.mubr.bf16.gmra.mrb[0].mxu0 %v1483
  %v1567 = vpop.f32.mrb[0].mxu0
  %v1568 = vadd.f32 %v1335, %v1567
  %v1569 = vpop.f32.mrb[0].mxu0
  %v1570 = vpop.f32.mrb[0].mxu0
  %v1571 = vadd.f32 %v1338, %v1570
  %v1572 = vpop.f32.mrb[0].mxu0
  %1573 = vmatprep.mubr.bf16.mxu0 0
  %1574 = vmatmul.mubr.bf16.gmra.mrb[0].mxu0 %v1486
  %v1575 = vpop.f32.mrb[0].mxu0
  %v1576 = vadd.f32 %v1343, %v1575
  %v1577 = vpop.f32.mrb[0].mxu0
  %v1578 = vpop.f32.mrb[0].mxu0
  %v1579 = vadd.f32 %v1346, %v1578
  %v1580 = vpop.f32.mrb[0].mxu0
  %1581 = vmatprep.mubr.bf16.mxu0 0
  %1582 = vmatmul.mubr.bf16.gmra.mrb[0].mxu0 %v1489
  %v1583 = vpop.f32.mrb[0].mxu0
  %v1584 = vadd.f32 %v1351, %v1583
  %v1585 = vpop.f32.mrb[0].mxu0
  %v1586 = vpop.f32.mrb[0].mxu0
  %v1587 = vadd.f32 %v1354, %v1586
  %v1588 = vpop.f32.mrb[0].mxu0
  %1589 = vmatprep.mubr.bf16.mxu0 0
  %1590 = vmatmul.mubr.bf16.gmra.mrb[0].mxu0 %v1492
  %v1591 = vpop.f32.mrb[0].mxu0
  %v1592 = vadd.f32 %v1359, %v1591
  %v1593 = vpop.f32.mrb[0].mxu0
  %v1594 = vpop.f32.mrb[0].mxu0
  %v1595 = vadd.f32 %v1362, %v1594
  %v1596 = vpop.f32.mrb[0].mxu0
  %1597 = vmatprep.mubr.bf16.mxu0 0
  %1598 = vmatmul.mubr.bf16.gmra.mrb[0].mxu0 %v1495
  %v1599 = vpop.f32.mrb[0].mxu0
  %v1600 = vadd.f32 %v1367, %v1599
  %v1601 = vpop.f32.mrb[0].mxu0
  %v1602 = vpop.f32.mrb[0].mxu0
  %v1603 = vadd.f32 %v1370, %v1602
  %v1604 = vpop.f32.mrb[0].mxu0
  %1605 = vmatprep.mubr.bf16.mxu0 0
  %1606 = vmatmul.mubr.bf16.gmra.mrb[0].mxu0 %v1498
  %v1607 = vpop.f32.mrb[0].mxu0
  %v1608 = vadd.f32 %v1375, %v1607
  %v1609 = vpop.f32.mrb[0].mxu0
  %v1610 = vpop.f32.mrb[0].mxu0
  %v1611 = vadd.f32 %v1378, %v1610
  %v1612 = vpop.f32.mrb[0].mxu0
  %1613 = vmatprep.mubr.bf16.mxu0 0
  %1614 = vmatmul.mubr.bf16.gmra.mrb[0].mxu0 %v1501
  %v1615 = vpop.f32.mrb[0].mxu0
  %v1616 = vadd.f32 %v1383, %v1615
  %v1617 = vpop.f32.mrb[0].mxu0
  %v1618 = vpop.f32.mrb[0].mxu0
  %v1619 = vadd.f32 %v1386, %v1618
  %v1620 = vpop.f32.mrb[0].mxu0
  %1621 = vmatprep.mubr.bf16.mxu0 0
  %1622 = vmatmul.mubr.bf16.gmra.mrb[0].mxu0 %v1504
  %v1623 = vpop.f32.mrb[0].mxu0
  %v1624 = vadd.f32 %v1391, %v1623
  %v1625 = vpop.f32.mrb[0].mxu0
  %v1626 = vpop.f32.mrb[0].mxu0
  %v1627 = vadd.f32 %v1394, %v1626
  %v1628 = vpop.f32.mrb[0].mxu0
  %1629 = vmatprep.mubr.bf16.mxu0 0
  %1630 = vmatmul.mubr.bf16.gmra.mrb[0].mxu0 %v1507
  %v1631 = vpop.f32.mrb[0].mxu0
  %v1632 = vadd.f32 %v1399, %v1631
  %v1633 = vpop.f32.mrb[0].mxu0
  %v1634 = vpop.f32.mrb[0].mxu0
  %v1635 = vadd.f32 %v1402, %v1634
  %v1636 = vpop.f32.mrb[0].mxu0
  %1637 = vmatprep.mubr.bf16.mxu0 0
  %1638 = vmatmul.mubr.bf16.gmra.mrb[0].mxu0 %v1510
  %v1639 = vpop.f32.mrb[0].mxu0
  %v1640 = vadd.f32 %v1407, %v1639
  %v1641 = vpop.f32.mrb[0].mxu0
  %v1642 = vpop.f32.mrb[0].mxu0
  %v1643 = vadd.f32 %v1410, %v1642
  %v1644 = vpop.f32.mrb[0].mxu0
  %1645 = vmatprep.mubr.bf16.mxu0 0
  %1646 = vmatmul.mubr.bf16.gmra.mrb[0].mxu0 %v1513
  %v1647 = vpop.f32.mrb[0].mxu0
  %v1648 = vadd.f32 %v1415, %v1647
  %v1649 = vpop.f32.mrb[0].mxu0
  %v1650 = vpop.f32.mrb[0].mxu0
  %v1651 = vadd.f32 %v1418, %v1650
  %v1652 = vpop.f32.mrb[0].mxu0
  %1653 = vmatprep.mubr.bf16.mxu0 0
  %1654 = vmatmul.mubr.bf16.gmra.mrb[0].mxu0 %v1516
  %v1655 = vpop.f32.mrb[0].mxu0
  %v1656 = vadd.f32 %v1423, %v1655
  %v1657 = vpop.f32.mrb[0].mxu0
  %v1658 = vpop.f32.mrb[0].mxu0
  %v1659 = vadd.f32 %v1426, %v1658
  %v1660 = vpop.f32.mrb[0].mxu0
  %1661 = vmatprep.mubr.bf16.mxu0 0
  %1662 = vmatmul.mubr.bf16.gmra.mrb[0].mxu0 %v1519
  %v1663 = vpop.f32.mrb[0].mxu0
  %v1664 = vadd.f32 %v1431, %v1663
  %v1665 = vpop.f32.mrb[0].mxu0
  %v1666 = vpop.f32.mrb[0].mxu0
  %v1667 = vadd.f32 %v1434, %v1666
  %v1668 = vpop.f32.mrb[0].mxu0
  %1669 = vmatprep.mubr.bf16.mxu0 0
  %1670 = vmatmul.mubr.bf16.gmra.mrb[0].mxu0 %v1522
  %v1671 = vpop.f32.mrb[0].mxu0
  %v1672 = vadd.f32 %v1439, %v1671
  %v1673 = vpop.f32.mrb[0].mxu0
  %v1674 = vpop.f32.mrb[0].mxu0
  %v1675 = vadd.f32 %v1442, %v1674
  %v1676 = vpop.f32.mrb[0].mxu0
  %1677 = vmatprep.mubr.bf16.mxu0 0
  %1678 = vmatmul.mubr.bf16.gmra.mrb[0].mxu0 %v1525
  %v1679 = vpop.f32.mrb[0].mxu0
  %v1680 = vadd.f32 %v1447, %v1679
  %v1681 = vpop.f32.mrb[0].mxu0
  %v1682 = vpop.f32.mrb[0].mxu0
  %v1683 = vadd.f32 %v1450, %v1682
  %v1684 = vpop.f32.mrb[0].mxu0
  %1685 = vmatprep.mubr.bf16.mxu0 0
  %1686 = vmatmul.mubr.bf16.gmra.mrb[0].mxu0 %v1528
  %v1687 = vpop.f32.mrb[0].mxu0
  %v1688 = vadd.f32 %v1455, %v1687
  %v1689 = vpop.f32.mrb[0].mxu0
  %v1690 = vpop.f32.mrb[0].mxu0
  %v1691 = vadd.f32 %v1458, %v1690
  %v1692 = vpop.f32.mrb[0].mxu0
  %1693 = vdwg.mxu0
  %v1694 = vld [vmem:[%s5] sm:$0x1]
  %v1696 = vlaneseq
  %v1697 = vshrl.u32 %v1696, 7
  %v1698 = vsub.s32 0, %v1697
  %v1699 = vrot.slane %v1694, %v1698
  %v1701 = vadd.f32 %v1568, %v1699
  %v1702 = vadd.f32 %v1571, %v1699
  %v1703 = vadd.f32 %v1576, %v1699
  %v1704 = vadd.f32 %v1579, %v1699
  %v1705 = vadd.f32 %v1584, %v1699
  %v1706 = vadd.f32 %v1587, %v1699
  %v1707 = vadd.f32 %v1592, %v1699
  %v1708 = vadd.f32 %v1595, %v1699
  %v1709 = vadd.f32 %v1600, %v1699
  %v1710 = vadd.f32 %v1603, %v1699
  %v1711 = vadd.f32 %v1608, %v1699
  %v1712 = vadd.f32 %v1611, %v1699
  %v1713 = vadd.f32 %v1616, %v1699
  %v1714 = vadd.f32 %v1619, %v1699
  %v1715 = vadd.f32 %v1624, %v1699
  %v1716 = vadd.f32 %v1627, %v1699
  %v1717 = vadd.f32 %v1632, %v1699
  %v1718 = vadd.f32 %v1635, %v1699
  %v1719 = vadd.f32 %v1640, %v1699
  %v1720 = vadd.f32 %v1643, %v1699
  %v1721 = vadd.f32 %v1648, %v1699
  %v1722 = vadd.f32 %v1651, %v1699
  %v1723 = vadd.f32 %v1656, %v1699
  %v1724 = vadd.f32 %v1659, %v1699
  %v1725 = vadd.f32 %v1664, %v1699
  %v1726 = vadd.f32 %v1667, %v1699
  %v1727 = vadd.f32 %v1672, %v1699
  %v1728 = vadd.f32 %v1675, %v1699
  %v1729 = vadd.f32 %v1680, %v1699
  %v1730 = vadd.f32 %v1683, %v1699
  %v1731 = vadd.f32 %v1688, %v1699
  %v1732 = vadd.f32 %v1691, %v1699
  %v1733 = vmax.f32 %v1701, 0.0
  %v1734 = vmax.f32 %v1702, 0.0
  %v1735 = vmax.f32 %v1703, 0.0
  %v1736 = vmax.f32 %v1704, 0.0
  %v1737 = vmax.f32 %v1705, 0.0
  %v1738 = vmax.f32 %v1706, 0.0
  %v1739 = vmax.f32 %v1707, 0.0
  %v1740 = vmax.f32 %v1708, 0.0
  %v1741 = vmax.f32 %v1709, 0.0
  %v1742 = vmax.f32 %v1710, 0.0
  %v1743 = vmax.f32 %v1711, 0.0
  %v1744 = vmax.f32 %v1712, 0.0
  %v1745 = vmax.f32 %v1713, 0.0
  %v1746 = vmax.f32 %v1714, 0.0
  %v1747 = vmax.f32 %v1715, 0.0
  %v1748 = vmax.f32 %v1716, 0.0
  %v1749 = vmax.f32 %v1717, 0.0
  %v1750 = vmax.f32 %v1718, 0.0
  %v1751 = vmax.f32 %v1719, 0.0
  %v1752 = vmax.f32 %v1720, 0.0
  %v1753 = vmax.f32 %v1721, 0.0
  %v1754 = vmax.f32 %v1722, 0.0
  %v1755 = vmax.f32 %v1723, 0.0
  %v1756 = vmax.f32 %v1724, 0.0
  %v1757 = vmax.f32 %v1725, 0.0
  %v1758 = vmax.f32 %v1726, 0.0
  %v1759 = vmax.f32 %v1727, 0.0
  %v1760 = vmax.f32 %v1728, 0.0
  %v1761 = vmax.f32 %v1729, 0.0
  %v1762 = vmax.f32 %v1730, 0.0
  %v1763 = vmax.f32 %v1731, 0.0
  %v1764 = vmax.f32 %v1732, 0.0
  %v1765 = vpack.c.bf16 %v1734, %v1733
  %v1766 = vpack.c.bf16 %v1736, %v1735
  %v1767 = vpack.c.bf16 %v1738, %v1737
  %v1768 = vpack.c.bf16 %v1740, %v1739
  %v1769 = vpack.c.bf16 %v1742, %v1741
  %v1770 = vpack.c.bf16 %v1744, %v1743
  %v1771 = vpack.c.bf16 %v1746, %v1745
  %v1772 = vpack.c.bf16 %v1748, %v1747
  %v1773 = vpack.c.bf16 %v1750, %v1749
  %v1774 = vpack.c.bf16 %v1752, %v1751
  %v1775 = vpack.c.bf16 %v1754, %v1753
  %v1776 = vpack.c.bf16 %v1756, %v1755
  %v1777 = vpack.c.bf16 %v1758, %v1757
  %v1778 = vpack.c.bf16 %v1760, %v1759
  %v1779 = vpack.c.bf16 %v1762, %v1761
  %v1780 = vpack.c.bf16 %v1764, %v1763
  %v1781 = vld [vmem:[%s6] sm:$0xf]
  %v1782 = vld [vmem:[%s6 + $0x4] sm:$0xf]
  %v1783 = vld [vmem:[%s6 + $0x8] sm:$0xf]
  %v1784 = vld [vmem:[%s6 + $0xc] sm:$0xf]
  %v1785 = vld [vmem:[%s6 + $0x10] sm:$0xf]
  %v1786 = vld [vmem:[%s6 + $0x14] sm:$0xf]
  %v1787 = vld [vmem:[%s6 + $0x18] sm:$0xf]
  %v1788 = vld [vmem:[%s6 + $0x1c] sm:$0xf]
  %v1789 = vld [vmem:[%s6 + $0x20] sm:$0xf]
  %v1790 = vld [vmem:[%s6 + $0x24] sm:$0xf]
  %v1791 = vld [vmem:[%s6 + $0x28] sm:$0xf]
  %v1792 = vld [vmem:[%s6 + $0x2c] sm:$0xf]
  %v1793 = vld [vmem:[%s6 + $0x30] sm:$0xf]
  %v1794 = vld [vmem:[%s6 + $0x34] sm:$0xf]
  %v1795 = vld [vmem:[%s6 + $0x38] sm:$0xf]
  %v1796 = vld [vmem:[%s6 + $0x3c] sm:$0xf]
  %v1797 = vld [vmem:[%s7] sm:$0x1]
  %v1799 = vlaneseq
  %v1800 = vshrl.u32 %v1799, 7
  %v1801 = vsub.s32 0, %v1800
  %v1802 = vrot.slane %v1797, %v1801
  %v1820 = vunpack.c.l.b16 %v1781
  %v1821 = vunpack.c.l.b16 %v1782
  %v1822 = vunpack.c.l.b16 %v1783
  %v1823 = vunpack.c.l.b16 %v1784
  %v1824 = vunpack.c.l.b16 %v1785
  %v1825 = vunpack.c.l.b16 %v1786
  %v1826 = vunpack.c.l.b16 %v1787
  %v1827 = vunpack.c.l.b16 %v1788
  %v1828 = vunpack.c.l.b16 %v1789
  %v1829 = vunpack.c.l.b16 %v1790
  %v1830 = vunpack.c.l.b16 %v1791
  %v1831 = vunpack.c.l.b16 %v1792
  %v1832 = vunpack.c.l.b16 %v1793
  %v1833 = vunpack.c.l.b16 %v1794
  %v1834 = vunpack.c.l.b16 %v1795
  %v1835 = vunpack.c.l.b16 %v1796
  %v1836 = vpack.c.b16 %v1821, %v1820
  %v1837 = vpack.c.b16 %v1823, %v1822
  %v1838 = vpack.c.b16 %v1825, %v1824
  %v1839 = vpack.c.b16 %v1827, %v1826
  %v1840 = vpack.c.b16 %v1829, %v1828
  %v1841 = vpack.c.b16 %v1831, %v1830
  %v1842 = vpack.c.b16 %v1833, %v1832
  %v1843 = vpack.c.b16 %v1835, %v1834
  %1852 = vmatprep.subr.bf16.mxu0 0
  %1853 = vmatpush1.bf16.msra.mxu0 %v1836
  %1854 = vmatprep.subr.bf16.mxu0 0
  %1855 = vmatpush1.bf16.msra.mxu0 %v1837
  %1856 = vmatprep.subr.bf16.mxu0 0
  %1857 = vmatpush1.bf16.msra.mxu0 %v1838
  %1858 = vmatprep.subr.bf16.mxu0 0
  %1859 = vmatpush1.bf16.msra.mxu0 %v1839
  %1860 = vmatprep.subr.bf16.mxu0 0
  %1861 = vmatpush1.bf16.msra.mxu0 %v1840
  %1862 = vmatprep.subr.bf16.mxu0 0
  %1863 = vmatpush1.bf16.msra.mxu0 %v1841
  %1864 = vmatprep.subr.bf16.mxu0 0
  %1865 = vmatpush1.bf16.msra.mxu0 %v1842
  %1866 = vmatprep.subr.bf16.mxu0 0
  %1867 = vmatpush1.bf16.msra.mxu0 %v1843
  %1868 = vmatprep.subr.bf16.mxu0 0
  %1869 = vmatpush1.bf16.msra.mxu0 0
  %1870 = vmatprep.subr.bf16.mxu0 0
  %1871 = vmatpush1.bf16.msra.mxu0 0
  %1872 = vmatprep.subr.bf16.mxu0 0
  %1873 = vmatpush1.bf16.msra.mxu0 0
  %1874 = vmatprep.subr.bf16.mxu0 0
  %1875 = vmatpush1.bf16.msra.mxu0 0
  %1876 = vmatprep.subr.bf16.mxu0 0
  %1877 = vmatpush1.bf16.msra.mxu0 0
  %1878 = vmatprep.subr.bf16.mxu0 0
  %1879 = vmatpush1.bf16.msra.mxu0 0
  %1880 = vmatprep.subr.bf16.mxu0 0
  %1881 = vmatpush1.bf16.msra.mxu0 0
  %1882 = vmatprep.subr.bf16.mxu0 0
  %1883 = vmatpush1.bf16.msra.mxu0 0
  %1884 = vmatprep.mubr.bf16.mxu0 0
  %1885 = vmatmul.mubr.bf16.gmra.mrb[0].mxu0 %v1765
  %v1886 = vpop.f32.mrb[0].mxu0
  %v1887 = vadd.f32 %v1802, %v1886
  %v1888 = vpop.f32.mrb[0].mxu0
  %v1889 = vpop.f32.mrb[0].mxu0
  %v1890 = vadd.f32 %v1802, %v1889
  %v1891 = vpop.f32.mrb[0].mxu0
  %1892 = vmatprep.mubr.bf16.mxu0 0
  %1893 = vmatmul.mubr.bf16.gmra.mrb[0].mxu0 %v1766
  %v1894 = vpop.f32.mrb[0].mxu0
  %v1895 = vadd.f32 %v1802, %v1894
  %v1896 = vpop.f32.mrb[0].mxu0
  %v1897 = vpop.f32.mrb[0].mxu0
  %v1898 = vadd.f32 %v1802, %v1897
  %v1899 = vpop.f32.mrb[0].mxu0
  %1900 = vmatprep.mubr.bf16.mxu0 0
  %1901 = vmatmul.mubr.bf16.gmra.mrb[0].mxu0 %v1767
  %v1902 = vpop.f32.mrb[0].mxu0
  %v1903 = vadd.f32 %v1802, %v1902
  %v1904 = vpop.f32.mrb[0].mxu0
  %v1905 = vpop.f32.mrb[0].mxu0
  %v1906 = vadd.f32 %v1802, %v1905
  %v1907 = vpop.f32.mrb[0].mxu0
  %1908 = vmatprep.mubr.bf16.mxu0 0
  %1909 = vmatmul.mubr.bf16.gmra.mrb[0].mxu0 %v1768
  %v1910 = vpop.f32.mrb[0].mxu0
  %v1911 = vadd.f32 %v1802, %v1910
  %v1912 = vpop.f32.mrb[0].mxu0
  %v1913 = vpop.f32.mrb[0].mxu0
  %v1914 = vadd.f32 %v1802, %v1913
  %v1915 = vpop.f32.mrb[0].mxu0
  %1916 = vmatprep.mubr.bf16.mxu0 0
  %1917 = vmatmul.mubr.bf16.gmra.mrb[0].mxu0 %v1769
  %v1918 = vpop.f32.mrb[0].mxu0
  %v1919 = vadd.f32 %v1802, %v1918
  %v1920 = vpop.f32.mrb[0].mxu0
  %v1921 = vpop.f32.mrb[0].mxu0
  %v1922 = vadd.f32 %v1802, %v1921
  %v1923 = vpop.f32.mrb[0].mxu0
  %1924 = vmatprep.mubr.bf16.mxu0 0
  %1925 = vmatmul.mubr.bf16.gmra.mrb[0].mxu0 %v1770
  %v1926 = vpop.f32.mrb[0].mxu0
  %v1927 = vadd.f32 %v1802, %v1926
  %v1928 = vpop.f32.mrb[0].mxu0
  %v1929 = vpop.f32.mrb[0].mxu0
  %v1930 = vadd.f32 %v1802, %v1929
  %v1931 = vpop.f32.mrb[0].mxu0
  %1932 = vmatprep.mubr.bf16.mxu0 0
  %1933 = vmatmul.mubr.bf16.gmra.mrb[0].mxu0 %v1771
  %v1934 = vpop.f32.mrb[0].mxu0
  %v1935 = vadd.f32 %v1802, %v1934
  %v1936 = vpop.f32.mrb[0].mxu0
  %v1937 = vpop.f32.mrb[0].mxu0
  %v1938 = vadd.f32 %v1802, %v1937
  %v1939 = vpop.f32.mrb[0].mxu0
  %1940 = vmatprep.mubr.bf16.mxu0 0
  %1941 = vmatmul.mubr.bf16.gmra.mrb[0].mxu0 %v1772
  %v1942 = vpop.f32.mrb[0].mxu0
  %v1943 = vadd.f32 %v1802, %v1942
  %v1944 = vpop.f32.mrb[0].mxu0
  %v1945 = vpop.f32.mrb[0].mxu0
  %v1946 = vadd.f32 %v1802, %v1945
  %v1947 = vpop.f32.mrb[0].mxu0
  %1948 = vmatprep.mubr.bf16.mxu0 0
  %1949 = vmatmul.mubr.bf16.gmra.mrb[0].mxu0 %v1773
  %v1950 = vpop.f32.mrb[0].mxu0
  %v1951 = vadd.f32 %v1802, %v1950
  %v1952 = vpop.f32.mrb[0].mxu0
  %v1953 = vpop.f32.mrb[0].mxu0
  %v1954 = vadd.f32 %v1802, %v1953
  %v1955 = vpop.f32.mrb[0].mxu0
  %1956 = vmatprep.mubr.bf16.mxu0 0
  %1957 = vmatmul.mubr.bf16.gmra.mrb[0].mxu0 %v1774
  %v1958 = vpop.f32.mrb[0].mxu0
  %v1959 = vadd.f32 %v1802, %v1958
  %v1960 = vpop.f32.mrb[0].mxu0
  %v1961 = vpop.f32.mrb[0].mxu0
  %v1962 = vadd.f32 %v1802, %v1961
  %v1963 = vpop.f32.mrb[0].mxu0
  %1964 = vmatprep.mubr.bf16.mxu0 0
  %1965 = vmatmul.mubr.bf16.gmra.mrb[0].mxu0 %v1775
  %v1966 = vpop.f32.mrb[0].mxu0
  %v1967 = vadd.f32 %v1802, %v1966
  %v1968 = vpop.f32.mrb[0].mxu0
  %v1969 = vpop.f32.mrb[0].mxu0
  %v1970 = vadd.f32 %v1802, %v1969
  %v1971 = vpop.f32.mrb[0].mxu0
  %1972 = vmatprep.mubr.bf16.mxu0 0
  %1973 = vmatmul.mubr.bf16.gmra.mrb[0].mxu0 %v1776
  %v1974 = vpop.f32.mrb[0].mxu0
  %v1975 = vadd.f32 %v1802, %v1974
  %v1976 = vpop.f32.mrb[0].mxu0
  %v1977 = vpop.f32.mrb[0].mxu0
  %v1978 = vadd.f32 %v1802, %v1977
  %v1979 = vpop.f32.mrb[0].mxu0
  %1980 = vmatprep.mubr.bf16.mxu0 0
  %1981 = vmatmul.mubr.bf16.gmra.mrb[0].mxu0 %v1777
  %v1982 = vpop.f32.mrb[0].mxu0
  %v1983 = vadd.f32 %v1802, %v1982
  %v1984 = vpop.f32.mrb[0].mxu0
  %v1985 = vpop.f32.mrb[0].mxu0
  %v1986 = vadd.f32 %v1802, %v1985
  %v1987 = vpop.f32.mrb[0].mxu0
  %1988 = vmatprep.mubr.bf16.mxu0 0
  %1989 = vmatmul.mubr.bf16.gmra.mrb[0].mxu0 %v1778
  %v1990 = vpop.f32.mrb[0].mxu0
  %v1991 = vadd.f32 %v1802, %v1990
  %v1992 = vpop.f32.mrb[0].mxu0
  %v1993 = vpop.f32.mrb[0].mxu0
  %v1994 = vadd.f32 %v1802, %v1993
  %v1995 = vpop.f32.mrb[0].mxu0
  %1996 = vmatprep.mubr.bf16.mxu0 0
  %1997 = vmatmul.mubr.bf16.gmra.mrb[0].mxu0 %v1779
  %v1998 = vpop.f32.mrb[0].mxu0
  %v1999 = vadd.f32 %v1802, %v1998
  %v2000 = vpop.f32.mrb[0].mxu0
  %v2001 = vpop.f32.mrb[0].mxu0
  %v2002 = vadd.f32 %v1802, %v2001
  %v2003 = vpop.f32.mrb[0].mxu0
  %2004 = vmatprep.mubr.bf16.mxu0 0
  %2005 = vmatmul.mubr.bf16.gmra.mrb[0].mxu0 %v1780
  %v2006 = vpop.f32.mrb[0].mxu0
  %v2007 = vadd.f32 %v1802, %v2006
  %v2008 = vpop.f32.mrb[0].mxu0
  %v2009 = vpop.f32.mrb[0].mxu0
  %v2010 = vadd.f32 %v1802, %v2009
  %v2011 = vpop.f32.mrb[0].mxu0
  %2012 = vdwg.mxu0
  %v2013 = vmax.f32 %v1887, 0.0
  %v2014 = vmax.f32 %v1890, 0.0
  %v2015 = vmax.f32 %v1895, 0.0
  %v2016 = vmax.f32 %v1898, 0.0
  %v2017 = vmax.f32 %v1903, 0.0
  %v2018 = vmax.f32 %v1906, 0.0
  %v2019 = vmax.f32 %v1911, 0.0
  %v2020 = vmax.f32 %v1914, 0.0
  %v2021 = vmax.f32 %v1919, 0.0
  %v2022 = vmax.f32 %v1922, 0.0
  %v2023 = vmax.f32 %v1927, 0.0
  %v2024 = vmax.f32 %v1930, 0.0
  %v2025 = vmax.f32 %v1935, 0.0
  %v2026 = vmax.f32 %v1938, 0.0
  %v2027 = vmax.f32 %v1943, 0.0
  %v2028 = vmax.f32 %v1946, 0.0
  %v2029 = vmax.f32 %v1951, 0.0
  %v2030 = vmax.f32 %v1954, 0.0
  %v2031 = vmax.f32 %v1959, 0.0
  %v2032 = vmax.f32 %v1962, 0.0
  %v2033 = vmax.f32 %v1967, 0.0
  %v2034 = vmax.f32 %v1970, 0.0
  %v2035 = vmax.f32 %v1975, 0.0
  %v2036 = vmax.f32 %v1978, 0.0
  %v2037 = vmax.f32 %v1983, 0.0
  %v2038 = vmax.f32 %v1986, 0.0
  %v2039 = vmax.f32 %v1991, 0.0
  %v2040 = vmax.f32 %v1994, 0.0
  %v2041 = vmax.f32 %v1999, 0.0
  %v2042 = vmax.f32 %v2002, 0.0
  %v2043 = vmax.f32 %v2007, 0.0
  %v2044 = vmax.f32 %v2010, 0.0
  %v2045 = vld [vmem:[%s8] sm:$0x1]
  %v2046 = vpack.c.bf16 %v2014, %v2013
  %v2047 = vpack.c.bf16 %v2016, %v2015
  %v2048 = vpack.c.bf16 %v2018, %v2017
  %v2049 = vpack.c.bf16 %v2020, %v2019
  %v2050 = vpack.c.bf16 %v2022, %v2021
  %v2051 = vpack.c.bf16 %v2024, %v2023
  %v2052 = vpack.c.bf16 %v2026, %v2025
  %v2053 = vpack.c.bf16 %v2028, %v2027
  %v2054 = vpack.c.bf16 %v2030, %v2029
  %v2055 = vpack.c.bf16 %v2032, %v2031
  %v2056 = vpack.c.bf16 %v2034, %v2033
  %v2057 = vpack.c.bf16 %v2036, %v2035
  %v2058 = vpack.c.bf16 %v2038, %v2037
  %v2059 = vpack.c.bf16 %v2040, %v2039
  %v2060 = vpack.c.bf16 %v2042, %v2041
  %v2061 = vpack.c.bf16 %v2044, %v2043
  %s2062 = sld [smem:[#allocation2]]
  %v2063 = vstv %s2062
  %vm2064 = vcmask 523264
  %v2066 = vsel %vm2064, %v2045, 0
  %v2069 = vsel %vm2064, %v2046, 0
  %v2072 = vsel %vm2064, %v2047, 0
  %v2075 = vsel %vm2064, %v2048, 0
  %v2078 = vsel %vm2064, %v2049, 0
  %v2081 = vsel %vm2064, %v2050, 0
  %v2084 = vsel %vm2064, %v2051, 0
  %v2087 = vsel %vm2064, %v2052, 0
  %v2090 = vsel %vm2064, %v2053, 0
  %v2093 = vsel %vm2064, %v2054, 0
  %v2096 = vsel %vm2064, %v2055, 0
  %v2099 = vsel %vm2064, %v2056, 0
  %v2102 = vsel %vm2064, %v2057, 0
  %v2105 = vsel %vm2064, %v2058, 0
  %v2108 = vsel %vm2064, %v2059, 0
  %v2111 = vsel %vm2064, %v2060, 0
  %v2114 = vsel %vm2064, %v2061, 0
  %2116 = vmatprep.subr.bf16.mxu0 0
  %2117 = vmatpush1.bf16.xpose.msra.mxu0 %v2069
  %2118 = vmatprep.subr.bf16.mxu0 0
  %2119 = vmatpush1.bf16.xpose.msra.mxu0 %v2072
  %2120 = vmatprep.subr.bf16.mxu0 0
  %2121 = vmatpush1.bf16.xpose.msra.mxu0 %v2075
  %2122 = vmatprep.subr.bf16.mxu0 0
  %2123 = vmatpush1.bf16.xpose.msra.mxu0 %v2078
  %2124 = vmatprep.subr.bf16.mxu0 0
  %2125 = vmatpush1.bf16.xpose.msra.mxu0 %v2081
  %2126 = vmatprep.subr.bf16.mxu0 0
  %2127 = vmatpush1.bf16.xpose.msra.mxu0 %v2084
  %2128 = vmatprep.subr.bf16.mxu0 0
  %2129 = vmatpush1.bf16.xpose.msra.mxu0 %v2087
  %2130 = vmatprep.subr.bf16.mxu0 0
  %2131 = vmatpush1.bf16.xpose.msra.mxu0 %v2090
  %2132 = vmatprep.subr.bf16.mxu0 0
  %2133 = vmatpush1.bf16.xpose.msra.mxu0 %v2093
  %2134 = vmatprep.subr.bf16.mxu0 0
  %2135 = vmatpush1.bf16.xpose.msra.mxu0 %v2096
  %2136 = vmatprep.subr.bf16.mxu0 0
  %2137 = vmatpush1.bf16.xpose.msra.mxu0 %v2099
  %2138 = vmatprep.subr.bf16.mxu0 0
  %2139 = vmatpush1.bf16.xpose.msra.mxu0 %v2102
  %2140 = vmatprep.subr.bf16.mxu0 0
  %2141 = vmatpush1.bf16.xpose.msra.mxu0 %v2105
  %2142 = vmatprep.subr.bf16.mxu0 0
  %2143 = vmatpush1.bf16.xpose.msra.mxu0 %v2108
  %2144 = vmatprep.subr.bf16.mxu0 0
  %2145 = vmatpush1.bf16.xpose.msra.mxu0 %v2111
  %2146 = vmatprep.subr.bf16.mxu0 0
  %2147 = vmatpush1.bf16.xpose.msra.mxu0 %v2114
  %2148 = vmatprep.mubr.bf16.mxu0 0
  %2149 = vmatmul.mubr.bf16.gmra.mrb[0].mxu0 %v2066
  %v2150 = vpop.f32.mrb[0].mxu0
  %v2151 = vadd.f32 %v2063, %v2150
  %v2152 = vpop.f32.mrb[0].mxu0
  %v2153 = vadd.f32 %v2063, %v2152
  %v2154 = vpop.f32.mrb[0].mxu0
  %v2155 = vpop.f32.mrb[0].mxu0
  %2156 = vdwg.mxu0
  %v2159 = vcombine.low %v2151, %v2153
  %v2161 = vunpack.c.l.s4 1966171168
  %v2162 = vunpack.c.0.s8 %v2161
  %v2163 = vlaneseq
  %v2164 = vshrl.u32 %v2163, 7
  %v2165 = vsub.s32 %v2162, %v2164
  %v2166 = vrot.slane %v2159, %v2165
  %v2168 = vunpack.c.l.s4 1966171168
  %v2169 = vunpack.c.0.s8 %v2168
  %v2170 = vlaneseq
  %v2171 = vshrl.u32 %v2170, 7
  %v2172 = vsub.s32 %v2169, %v2171
  %v2173 = vrot.slane %v2166, %v2172
  %v2175 = vlaneseq
  %vm2176 = vcmp.ge.s32.totalorder %v2175, 0
  %vm2177 = vcmp.lt.s32.totalorder %v2175, 256
  %vm2178 = vmand %vm2176, %vm2177
  %2179 = vst.msk [vmem:[%s10] sm:$0x3] %vm2178, %v2173
  // Predicated region
  $region42: #{ncf_forward.1} parent=0 // pred_check
    _
  $region43: #{ncf_forward.1} parent=0 // pred_check_branch
    %2181 = sbr.rel (0) target = $region45
  $region44: #{ncf_forward.1} parent=0 // pred_region
    _
  $region45: #{ncf_forward.1} parent=0 // pred_fallthru
    _
  // Predicated region
  $region46: #{ncf_forward.1} parent=0 // pred_check
    _
  $region47: #{ncf_forward.1} parent=0 // pred_check_branch
    %2183 = sbr.rel (0) target = $region49
  $region48: #{ncf_forward.1} parent=0 // pred_region
    _
  $region49: #{ncf_forward.1} parent=0 // pred_fallthru
    _

</llo_original>
